<compile_context>
chip_gen: v5e
topology: v5e:2x2
jax: 0.10.0
libtpu: 0.0.40
codegen_flags: <defaults>
</compile_context>

<pallas_src>
import functools

import jax
import jax.numpy as jnp
from jax.experimental import pallas as pl
from jax.experimental.pallas import tpu as pltpu

H1, H2, OUT = 16, 8, 2
PAD_W = 16      # lane width of the packed weight slab (>= H1)
_ALIGN = 16     # row alignment of slab sections (covers f32 (8) and bf16 (16) sublane tiling)


def _round_up(n, m):
    return ((n + m - 1) // m) * m


def init_params(key, max_feats):
    # Deterministic init mirroring nn.Linear's default U(-1/sqrt(fan_in), 1/sqrt(fan_in)).
    # Weights stored transposed vs PyTorch: W has shape (in_features, out_features).
    dims = [(max_feats, H1), (H1, H2), (H2, OUT)]
    params = []
    for fan_in, fan_out in dims:
        key, kw, kb = jax.random.split(key, 3)
        bound = 1.0 / jnp.sqrt(jnp.float32(fan_in))
        w = jax.random.uniform(kw, (fan_in, fan_out), jnp.float32, -bound, bound)
        b = jax.random.uniform(kb, (fan_out,), jnp.float32, -bound, bound)
        params.extend([w, b])
    return tuple(params)


def pack_params(params, F, w_dtype=jnp.float32):
    """Pack weights into one slab (x-dtype) and biases into a tiny f32 slab.

    Weight slab rows (F_al = round_up(F, 16); sections 16-row aligned, zero-padded):
      [0, F)              w1  (F, 16)
      [F_al, F_al+16)     w2  (16, 16)  cols >= 8 are 0
      [F_al+16, F_al+32)  w3  (16, 16)  rows >= 8 and cols >= 2 are 0
    Bias slab (8, 16) f32:
      row 0: b1 (16)   row 1: b2 (8, rest 0)   rows 2..3, col 0: b3 stored as a column.
    Zero padding keeps the padded matmul chain numerically identical to the un-padded MLP.
    """
    w1, b1, w2, b2, w3, b3 = params
    F_al = _round_up(F, _ALIGN)
    rows = F_al + 2 * H1
    w_slab = jnp.zeros((rows, PAD_W), jnp.float32)
    w_slab = w_slab.at[0:F, 0:H1].set(w1)
    w_slab = w_slab.at[F_al:F_al + H1, 0:H2].set(w2)
    w_slab = w_slab.at[F_al + H1:F_al + H1 + H2, 0:OUT].set(w3)
    w_slab = w_slab.astype(w_dtype)

    b_slab = jnp.zeros((8, PAD_W), jnp.float32)
    b_slab = b_slab.at[0, 0:H1].set(b1)
    b_slab = b_slab.at[1, 0:H2].set(b2)
    b_slab = b_slab.at[2:2 + OUT, 0].set(b3)
    return w_slab, b_slab


def mlp_kernel(F, F_al, x_ref, w_ref, b_ref, o_ref):
    x = x_ref[...]                                  # (tile_b, F), f32 or bf16
    exact_f32 = x.dtype == jnp.float32
    prec = jax.lax.Precision.HIGHEST if exact_f32 else jax.lax.Precision.DEFAULT

    w1 = w_ref[0:F, :]                              # (F, 16)   resident, already in x dtype
    w2 = w_ref[F_al:F_al + H1, :]                   # (16, 16)  16-row-aligned static view
    w3 = w_ref[F_al + H1:F_al + 2 * H1, :]          # (16, 16)
    b1 = b_ref[0:1, :]                              # (1, 16)   f32
    b2 = b_ref[1:2, :]                              # (1, 16)   f32 (padded)
    b3 = b_ref[2:2 + OUT, 0:1]                      # (2, 1)    f32, stored as a column

    h1 = jnp.dot(x, w1, preferred_element_type=jnp.float32, precision=prec)      # (tb, 16)
    h1 = jnp.maximum(h1 + b1, 0.0)
    h2 = jnp.dot(h1.astype(w2.dtype), w2,
                 preferred_element_type=jnp.float32, precision=prec)             # (tb, 16)
    h2 = jnp.maximum(h2 + b2, 0.0)                  # padded lanes stay exactly 0
    # Emit the final layer already transposed: out_t[j, b] = sum_k w3[k, j] * h2[b, k].
    # Gives a lane-dense (2, tile_b) store with zero extra transposes (MXU contracts either way).
    out_t = jax.lax.dot_general(
        w3, h2.astype(w3.dtype),
        dimension_numbers=(((0,), (1,)), ((), ())),
        preferred_element_type=jnp.float32, precision=prec)                       # (16, tb)
    o_ref[...] = (out_t[0:OUT, :] + b3).astype(o_ref.dtype)


def _choose_tile_b(B, F, itemsize, *, target_block_bytes=2 << 20, vmem_budget=24 << 20):
    """Pick the batch tile by bytes (~2 MiB x block), 128-row aligned, VMEM-budgeted."""
    B_pad = _round_up(max(B, 1), 128)
    rows = max(128, target_block_bytes // max(F * itemsize, 1))
    rows = min(_round_up(rows, 128), B_pad)
    # v7x: keep >= 2 grid steps so the "parallel" axis feeds both TensorCores.
    if B_pad >= 2 * 128 and rows > B_pad // 2:
        rows = max(128, ((B_pad // 2) // 128) * 128)
    # VMEM budget: double-buffered x blocks + resident slabs + output blocks.
    F_al = _round_up(F, _ALIGN)
    fixed = 2 * (F_al + 2 * H1) * PAD_W * itemsize + 2 * 8 * PAD_W * 4
    while rows > 128 and (2 * rows * F * itemsize + 2 * OUT * rows * 4 + fixed) > vmem_budget:
        rows -= 128
    return rows


def mlp_forward(x, w_slab, b_slab, F, *, tile_b=None):
    """x: (B, F) activations (f32 or bf16); slabs from pack_params(..., w_dtype=x.dtype).
    Returns (B, 2) f32."""
    B = x.shape[0]
    assert x.shape[1] == F
    assert w_slab.dtype == x.dtype, "pack the weight slab in the x dtype"
    itemsize = x.dtype.itemsize
    F_al = _round_up(F, _ALIGN)
    rows_w = w_slab.shape[0]

    if tile_b is None:
        tile_b = _choose_tile_b(B, F, itemsize)
    tile_b = max(128, _round_up(tile_b, 128))
    B_pad = _round_up(B, tile_b)
    if B_pad != B:
        x = jnp.pad(x, ((0, B_pad - B), (0, 0)))
    grid = (B_pad // tile_b,)

    needed = (2 * tile_b * F * itemsize           # double-buffered x stream
              + 2 * rows_w * PAD_W * itemsize     # resident weight slab
              + 2 * 8 * PAD_W * 4                 # bias slab
              + 2 * OUT * tile_b * 4)             # output blocks
    vmem_limit = int(min(32 << 20, max(needed + (2 << 20), 8 << 20)))

    flops = 2 * B_pad * (F * H1 + H1 * H2 + H2 * OUT)
    bytes_accessed = (B_pad * F * itemsize                # x stream (dominant)
                      + OUT * B_pad * 4                   # output
                      + rows_w * PAD_W * itemsize         # weight slab (read once)
                      + 8 * PAD_W * 4)                    # bias slab

    out_t = pl.pallas_call(
        functools.partial(mlp_kernel, F, F_al),
        out_shape=jax.ShapeDtypeStruct((OUT, B_pad), jnp.float32),
        grid=grid,
        in_specs=[
            pl.BlockSpec((tile_b, F), lambda i: (i, 0)),        # streamed x tile
            pl.BlockSpec((rows_w, PAD_W), lambda i: (0, 0)),    # resident weight slab
            pl.BlockSpec((8, PAD_W), lambda i: (0, 0)),         # resident bias slab
        ],
        out_specs=pl.BlockSpec((OUT, tile_b), lambda i: (0, i)),  # lane-dense output
        compiler_params=pltpu.CompilerParams(
            dimension_semantics=("parallel",),
            vmem_limit_bytes=vmem_limit,
        ),
        cost_estimate=pl.CostEstimate(
            flops=flops, transcendentals=0, bytes_accessed=bytes_accessed),
    )(x, w_slab, b_slab)

    return out_t.T[:B]


def mlp_reference(x, params):
    w1, b1, w2, b2, w3, b3 = params
    hp = jax.lax.Precision.HIGHEST
    h1 = jnp.maximum(jnp.dot(x.astype(jnp.float32), w1, precision=hp) + b1, 0.0)
    h2 = jnp.maximum(jnp.dot(h1, w2, precision=hp) + b2, 0.0)
    return jnp.dot(h2, w3, precision=hp) + b3


if __name__ == "__main__":
    key = jax.random.PRNGKey(0)
    key, kx = jax.random.split(key)

    B, F = 8, 128  # small shapes consistent with MLP(max_feats=F) on a batch of feature rows
    x = jax.random.normal(kx, (B, F), dtype=jnp.float32)
    params = init_params(key, F)

    ref = mlp_reference(x, params)

    # f32 path (exact f32 accumulation via precision=HIGHEST).
    w_slab, b_slab = pack_params(params, F, w_dtype=jnp.float32)
    out = jax.block_until_ready(mlp_forward(x, w_slab, b_slab, F))
    assert out.shape == (B, OUT)
    assert jnp.allclose(out, ref, atol=1e-5, rtol=1e-5), "Pallas f32 output mismatch vs reference"

    # bf16 path: only used when x already arrives in bf16 upstream (here: built in bf16).
    x_bf16 = jax.random.normal(kx, (B, F), dtype=jnp.bfloat16)
    ref_bf16_in = mlp_reference(x_bf16, params)
    w_slab16, b_slab16 = pack_params(params, F, w_dtype=jnp.bfloat16)
    out_bf16 = jax.block_until_ready(mlp_forward(x_bf16, w_slab16, b_slab16, F))
    assert out_bf16.shape == (B, OUT)
    assert jnp.allclose(out_bf16, ref_bf16_in, atol=5e-2, rtol=5e-2), \
        "Pallas bf16 output mismatch vs reference"

    print("KERNEL_OK")
</pallas_src>

<mosaic_0001>
module attributes {stable_mosaic.version = 11 : i64} {
  func.func @mlp_kernel(%arg0: i32, %arg1: memref<128x128xf32, #tpu.memory_space<vmem>>, %arg2: memref<160x16xf32, #tpu.memory_space<vmem>>, %arg3: memref<8x16xf32, #tpu.memory_space<vmem>>, %arg4: memref<2x128xf32, #tpu.memory_space<vmem>>) attributes {dimension_semantics = [#tpu.dimension_semantics<parallel>], iteration_bounds = array<i64: 1>, scalar_prefetch = 0 : i64, scratch_operands = 0 : i64, tpu.core_type = #tpu.core_type<tc>, window_params = [{transform_indices = @transform_0, window_bounds = array<i64: 128, 128>}, {pipeline_mode = #tpu.pipeline_mode<synchronous>, transform_indices = @transform_1, window_bounds = array<i64: 160, 16>}, {pipeline_mode = #tpu.pipeline_mode<synchronous>, transform_indices = @transform_2, window_bounds = array<i64: 8, 16>}, {transform_indices = @transform_3, window_bounds = array<i64: 2, 128>}]} {
    %c0 = arith.constant 0 : index
    %c0_0 = arith.constant 0 : index
    %0 = vector.load %arg1[%c0, %c0_0] : memref<128x128xf32, #tpu.memory_space<vmem>>, vector<128x128xf32>
    %c0_1 = arith.constant 0 : index
    %c0_2 = arith.constant 0 : index
    %1 = vector.load %arg2[%c0_1, %c0_2] : memref<160x16xf32, #tpu.memory_space<vmem>>, vector<128x16xf32>
    %c128 = arith.constant 128 : index
    %c0_3 = arith.constant 0 : index
    %2 = vector.load %arg2[%c128, %c0_3] : memref<160x16xf32, #tpu.memory_space<vmem>>, vector<16x16xf32>
    %c144 = arith.constant 144 : index
    %c0_4 = arith.constant 0 : index
    %3 = vector.load %arg2[%c144, %c0_4] : memref<160x16xf32, #tpu.memory_space<vmem>>, vector<16x16xf32>
    %c0_5 = arith.constant 0 : index
    %c0_6 = arith.constant 0 : index
    %4 = vector.load %arg3[%c0_5, %c0_6] : memref<8x16xf32, #tpu.memory_space<vmem>>, vector<1x16xf32>
    %c1 = arith.constant 1 : index
    %c0_7 = arith.constant 0 : index
    %5 = vector.load %arg3[%c1, %c0_7] : memref<8x16xf32, #tpu.memory_space<vmem>>, vector<1x16xf32>
    %c2 = arith.constant 2 : index
    %c0_8 = arith.constant 0 : index
    %6 = vector.load %arg3[%c2, %c0_8] : memref<8x16xf32, #tpu.memory_space<vmem>>, vector<2x1xf32>
    %cst = arith.constant dense<0.000000e+00> : vector<128x16xf32>
    %7 = tpu.matmul %0, %1, %cst {dimension_numbers = #tpu.dot_dimension_numbers<[1], [0], [0], [1], [0, 0, 1, 1], [], []>, precision = #tpu.contract_precision<fp32>} : vector<128x128xf32>, vector<128x16xf32>, vector<128x16xf32> -> vector<128x16xf32>
    %8 = vector.broadcast %4 : vector<1x16xf32> to vector<128x16xf32>
    %9 = arith.addf %7, %8 : vector<128x16xf32>
    %cst_9 = arith.constant 0.000000e+00 : f32
    %10 = vector.broadcast %cst_9 : f32 to vector<128x16xf32>
    %11 = arith.maximumf %9, %10 : vector<128x16xf32>
    %cst_10 = arith.constant dense<0.000000e+00> : vector<128x16xf32>
    %12 = tpu.matmul %11, %2, %cst_10 {dimension_numbers = #tpu.dot_dimension_numbers<[1], [0], [0], [1], [0, 0, 1, 1], [], []>, precision = #tpu.contract_precision<fp32>} : vector<128x16xf32>, vector<16x16xf32>, vector<128x16xf32> -> vector<128x16xf32>
    %13 = vector.broadcast %5 : vector<1x16xf32> to vector<128x16xf32>
    %14 = arith.addf %12, %13 : vector<128x16xf32>
    %cst_11 = arith.constant 0.000000e+00 : f32
    %15 = vector.broadcast %cst_11 : f32 to vector<128x16xf32>
    %16 = arith.maximumf %14, %15 : vector<128x16xf32>
    %cst_12 = arith.constant dense<0.000000e+00> : vector<16x128xf32>
    %17 = tpu.matmul %3, %16, %cst_12 {dimension_numbers = #tpu.dot_dimension_numbers<[0], [1], [1], [0], [0, 1, 1, 0], [], []>, precision = #tpu.contract_precision<fp32>} : vector<16x16xf32>, vector<128x16xf32>, vector<16x128xf32> -> vector<16x128xf32>
    %18 = vector.extract_strided_slice %17 {offsets = [0, 0], sizes = [2, 128], strides = [1, 1]} : vector<16x128xf32> to vector<2x128xf32>
    %19 = vector.broadcast %6 : vector<2x1xf32> to vector<2x128xf32>
    %20 = arith.addf %18, %19 : vector<2x128xf32>
    %c0_13 = arith.constant 0 : index
    %c0_14 = arith.constant 0 : index
    %21 = vector.load %arg4[%c0_13, %c0_14] : memref<2x128xf32, #tpu.memory_space<vmem>>, vector<2x128xf32>
    tpu.vector_store %arg4[%c0_13, %c0_14], %20 {strides = array<i32>} : memref<2x128xf32, #tpu.memory_space<vmem>>, vector<2x128xf32>,
    return
  }
  func.func @transform_0(%arg0: i32) -> (i32, i32) {
    %c0_i32 = arith.constant 0 : i32
    %c0_i32_0 = arith.constant 0 : i32
    return %arg0, %c0_i32 : i32, i32
  }
  func.func @transform_1(%arg0: i32) -> (i32, i32) {
    %c0_i32 = arith.constant 0 : i32
    %c0_i32_0 = arith.constant 0 : i32
    %c0_i32_1 = arith.constant 0 : i32
    return %c0_i32, %c0_i32_0 : i32, i32
  }
  func.func @transform_2(%arg0: i32) -> (i32, i32) {
    %c0_i32 = arith.constant 0 : i32
    %c0_i32_0 = arith.constant 0 : i32
    %c0_i32_1 = arith.constant 0 : i32
    return %c0_i32, %c0_i32_0 : i32, i32
  }
  func.func @transform_3(%arg0: i32) -> (i32, i32) {
    %c0_i32 = arith.constant 0 : i32
    %c0_i32_0 = arith.constant 0 : i32
    return %c0_i32, %arg0 : i32, i32
  }
}

</mosaic_0001>

<llo_original>
// kernel: tpu_custom_call.1
$region0: #{tpu_custom_call.1}
  #allocation0 [shape = 'u32[]', space=smem, size = 0x4, offset = 0x4, fixed_abs, tag = 'smem constant byte address 0x4 - core index']
  #allocation1 [shape = 'u32[72,128]{1,0:T(1,128)}', space=vmem, size = 0x9000, scoped, tag = 'internal scratch']
  %s0 = inlined_call_operand.vmem [shape: f32[128,128], index: 0, kind: input, shape index: {}]
  %s1 = inlined_call_operand.vmem [shape: f32[160,16], index: 1, kind: input, shape index: {}]
  %s2 = inlined_call_operand.vmem [shape: f32[8,16], index: 2, kind: input, shape index: {}]
  %s3 = inlined_call_operand.hbm [shape: f32[2,128], index: 3, kind: output, shape index: {}]
  %s4 = sld [smem:[#allocation0]]
  $region22: #{tpu_custom_call.1} parent=0
    _
  %s6 = ssub.s32 1, %s4
  %s7 = scalar_select 0, %s6, %s4
  $region1: #{tpu_custom_call.1} parent=0
    #allocation2 [shape = 'u8[1024]{0}', space=vmem, size = 0x400, scoped, tag = 'output window, operand 0, single buffered']
    #allocation3 [shape = 's32[1]{0}', space=sflag, size = 0x4, scoped, tag = 'scoped memory for tpu_custom_call.1']
    %8 = vsyncpa [#allocation3], 0
    // Predicated region
    $region2: #{tpu_custom_call.1} parent=1 // pred_check
      _
    $region3: #{tpu_custom_call.1} parent=1 // pred_check_branch
      %10 = sbr.rel (0) target = $region5
    $region4: #{tpu_custom_call.1} parent=1 // pred_region
      _
    $region5: #{tpu_custom_call.1} parent=1 // pred_fallthru
      _
    // Predicated region
    $region6: #{tpu_custom_call.1} parent=1 // pred_check
      _
    $region7: #{tpu_custom_call.1} parent=1 // pred_check_branch
      %12 = sbr.rel (0) target = $region9
    $region8: #{tpu_custom_call.1} parent=1 // pred_region
      _
    $region9: #{tpu_custom_call.1} parent=1 // pred_fallthru
      _
    // Predicated region
    $region10: #{tpu_custom_call.1} parent=1 // pred_check
      _
    $region11: #{tpu_custom_call.1} parent=1 // pred_check_branch
      %14 = sbr.rel (0) target = $region13
    $region12: #{tpu_custom_call.1} parent=1 // pred_region
      _
    $region13: #{tpu_custom_call.1} parent=1 // pred_fallthru
      _
    %v15 = vld [vmem:[%s0] sm:$0xff]
    %v16 = vld [vmem:[%s0 + $0x8] sm:$0xff]
    %v17 = vld [vmem:[%s0 + $0x10] sm:$0xff]
    %v18 = vld [vmem:[%s0 + $0x18] sm:$0xff]
    %v19 = vld [vmem:[%s0 + $0x20] sm:$0xff]
    %v20 = vld [vmem:[%s0 + $0x28] sm:$0xff]
    %v21 = vld [vmem:[%s0 + $0x30] sm:$0xff]
    %v22 = vld [vmem:[%s0 + $0x38] sm:$0xff]
    %v23 = vld [vmem:[%s0 + $0x40] sm:$0xff]
    %v24 = vld [vmem:[%s0 + $0x48] sm:$0xff]
    %v25 = vld [vmem:[%s0 + $0x50] sm:$0xff]
    %v26 = vld [vmem:[%s0 + $0x58] sm:$0xff]
    %v27 = vld [vmem:[%s0 + $0x60] sm:$0xff]
    %v28 = vld [vmem:[%s0 + $0x68] sm:$0xff]
    %v29 = vld [vmem:[%s0 + $0x70] sm:$0xff]
    %v30 = vld [vmem:[%s0 + $0x78] sm:$0xff]
    %v31 = vld [vmem:[%s1] sm:$0xff]
    %v32 = vld [vmem:[%s1 + $0x8] sm:$0xff]
    %v33 = vld [vmem:[%s1 + $0x10] sm:$0xff]
    %v34 = vld [vmem:[%s1 + $0x18] sm:$0xff]
    %v35 = vld [vmem:[%s1 + $0x20] sm:$0xff]
    %v36 = vld [vmem:[%s1 + $0x28] sm:$0xff]
    %v37 = vld [vmem:[%s1 + $0x30] sm:$0xff]
    %v38 = vld [vmem:[%s1 + $0x38] sm:$0xff]
    %v39 = vld [vmem:[%s1 + $0x40] sm:$0xff]
    %v40 = vld [vmem:[%s1 + $0x48] sm:$0xff]
    %v41 = vld [vmem:[%s1 + $0x50] sm:$0xff]
    %v42 = vld [vmem:[%s1 + $0x58] sm:$0xff]
    %v43 = vld [vmem:[%s1 + $0x60] sm:$0xff]
    %v44 = vld [vmem:[%s1 + $0x68] sm:$0xff]
    %v45 = vld [vmem:[%s1 + $0x70] sm:$0xff]
    %v46 = vld [vmem:[%s1 + $0x78] sm:$0xff]
    %v47 = vld [vmem:[%s1 + $0x80] sm:$0xff]
    %v48 = vld [vmem:[%s1 + $0x88] sm:$0xff]
    %v49 = vld [vmem:[%s1 + $0x90] sm:$0xff]
    %v50 = vld [vmem:[%s1 + $0x98] sm:$0xff]
    %v51 = vld [vmem:[%s2] sm:$0x1]
    %v52 = vld [vmem:[%s2 + $0x1] sm:$0x1]
    %v53 = vld [vmem:[%s2 + $0x2] sm:$0x3]
    %v54 = vperm.slane %v51, 0
    %v55 = vand.u32 %v46, 4294901760
    %56 = vmatpush.msra.mxu0 %v55
    %v57 = vand.u32 %v45, 4294901760
    %58 = vmatpush.msra.mxu0 %v57
    %v59 = vand.u32 %v44, 4294901760
    %60 = vmatpush.msra.mxu0 %v59
    %v61 = vand.u32 %v43, 4294901760
    %62 = vmatpush.msra.mxu0 %v61
    %v63 = vand.u32 %v42, 4294901760
    %64 = vmatpush.msra.mxu0 %v63
    %v65 = vand.u32 %v41, 4294901760
    %66 = vmatpush.msra.mxu0 %v65
    %v67 = vand.u32 %v40, 4294901760
    %68 = vmatpush.msra.mxu0 %v67
    %v69 = vand.u32 %v39, 4294901760
    %70 = vmatpush.msra.mxu0 %v69
    %v71 = vand.u32 %v38, 4294901760
    %72 = vmatpush.msra.mxu0 %v71
    %v73 = vand.u32 %v37, 4294901760
    %74 = vmatpush.msra.mxu0 %v73
    %v75 = vand.u32 %v36, 4294901760
    %76 = vmatpush.msra.mxu0 %v75
    %v77 = vand.u32 %v35, 4294901760
    %78 = vmatpush.msra.mxu0 %v77
    %v79 = vand.u32 %v34, 4294901760
    %80 = vmatpush.msra.mxu0 %v79
    %v81 = vand.u32 %v33, 4294901760
    %82 = vmatpush.msra.mxu0 %v81
    %v83 = vand.u32 %v32, 4294901760
    %84 = vmatpush.msra.mxu0 %v83
    %v85 = vand.u32 %v31, 4294901760
    %86 = vmatpush.msra.mxu0 %v85
    %v87 = vand.u32 %v15, 4294901760
    %v88 = vsub.f32 %v15, %v87
    %v89 = vand.u32 %v88, 4294901760
    %v90 = vsub.f32 %v88, %v89
    %v91 = vand.u32 %v90, 4294901760
    %92 = vmatmul.f32.gmra.mxu0 %v91
    %v93 = vpop.f32.mrf.mxu0
    %v94 = vadd.f32 %v54, %v93
    %v95 = vand.u32 %v16, 4294901760
    %v96 = vsub.f32 %v16, %v95
    %v97 = vand.u32 %v96, 4294901760
    %v98 = vsub.f32 %v96, %v97
    %v99 = vand.u32 %v98, 4294901760
    %100 = vmatmul.f32.gmra.mxu0 %v99
    %v101 = vpop.f32.mrf.mxu0
    %v102 = vadd.f32 %v54, %v101
    %v103 = vand.u32 %v17, 4294901760
    %v104 = vsub.f32 %v17, %v103
    %v105 = vand.u32 %v104, 4294901760
    %v106 = vsub.f32 %v104, %v105
    %v107 = vand.u32 %v106, 4294901760
    %108 = vmatmul.f32.gmra.mxu0 %v107
    %v109 = vpop.f32.mrf.mxu0
    %v110 = vadd.f32 %v54, %v109
    %v111 = vand.u32 %v18, 4294901760
    %v112 = vsub.f32 %v18, %v111
    %v113 = vand.u32 %v112, 4294901760
    %v114 = vsub.f32 %v112, %v113
    %v115 = vand.u32 %v114, 4294901760
    %116 = vmatmul.f32.gmra.mxu0 %v115
    %v117 = vpop.f32.mrf.mxu0
    %v118 = vadd.f32 %v54, %v117
    %v119 = vand.u32 %v19, 4294901760
    %v120 = vsub.f32 %v19, %v119
    %v121 = vand.u32 %v120, 4294901760
    %v122 = vsub.f32 %v120, %v121
    %v123 = vand.u32 %v122, 4294901760
    %124 = vmatmul.f32.gmra.mxu0 %v123
    %v125 = vpop.f32.mrf.mxu0
    %v126 = vadd.f32 %v54, %v125
    %v127 = vand.u32 %v20, 4294901760
    %v128 = vsub.f32 %v20, %v127
    %v129 = vand.u32 %v128, 4294901760
    %v130 = vsub.f32 %v128, %v129
    %v131 = vand.u32 %v130, 4294901760
    %132 = vmatmul.f32.gmra.mxu0 %v131
    %v133 = vpop.f32.mrf.mxu0
    %v134 = vadd.f32 %v54, %v133
    %v135 = vand.u32 %v21, 4294901760
    %v136 = vsub.f32 %v21, %v135
    %v137 = vand.u32 %v136, 4294901760
    %v138 = vsub.f32 %v136, %v137
    %v139 = vand.u32 %v138, 4294901760
    %140 = vmatmul.f32.gmra.mxu0 %v139
    %v141 = vpop.f32.mrf.mxu0
    %v142 = vadd.f32 %v54, %v141
    %v143 = vand.u32 %v22, 4294901760
    %v144 = vsub.f32 %v22, %v143
    %v145 = vand.u32 %v144, 4294901760
    %v146 = vsub.f32 %v144, %v145
    %v147 = vand.u32 %v146, 4294901760
    %148 = vmatmul.f32.gmra.mxu0 %v147
    %v149 = vpop.f32.mrf.mxu0
    %v150 = vadd.f32 %v54, %v149
    %v151 = vand.u32 %v23, 4294901760
    %v152 = vsub.f32 %v23, %v151
    %v153 = vand.u32 %v152, 4294901760
    %v154 = vsub.f32 %v152, %v153
    %v155 = vand.u32 %v154, 4294901760
    %156 = vmatmul.f32.gmra.mxu0 %v155
    %v157 = vpop.f32.mrf.mxu0
    %v158 = vadd.f32 %v54, %v157
    %v159 = vand.u32 %v24, 4294901760
    %v160 = vsub.f32 %v24, %v159
    %v161 = vand.u32 %v160, 4294901760
    %v162 = vsub.f32 %v160, %v161
    %v163 = vand.u32 %v162, 4294901760
    %164 = vmatmul.f32.gmra.mxu0 %v163
    %v165 = vpop.f32.mrf.mxu0
    %v166 = vadd.f32 %v54, %v165
    %v167 = vand.u32 %v25, 4294901760
    %v168 = vsub.f32 %v25, %v167
    %v169 = vand.u32 %v168, 4294901760
    %v170 = vsub.f32 %v168, %v169
    %v171 = vand.u32 %v170, 4294901760
    %172 = vmatmul.f32.gmra.mxu0 %v171
    %v173 = vpop.f32.mrf.mxu0
    %v174 = vadd.f32 %v54, %v173
    %v175 = vand.u32 %v26, 4294901760
    %v176 = vsub.f32 %v26, %v175
    %v177 = vand.u32 %v176, 4294901760
    %v178 = vsub.f32 %v176, %v177
    %v179 = vand.u32 %v178, 4294901760
    %180 = vmatmul.f32.gmra.mxu0 %v179
    %v181 = vpop.f32.mrf.mxu0
    %v182 = vadd.f32 %v54, %v181
    %v183 = vand.u32 %v27, 4294901760
    %v184 = vsub.f32 %v27, %v183
    %v185 = vand.u32 %v184, 4294901760
    %v186 = vsub.f32 %v184, %v185
    %v187 = vand.u32 %v186, 4294901760
    %188 = vmatmul.f32.gmra.mxu0 %v187
    %v189 = vpop.f32.mrf.mxu0
    %v190 = vadd.f32 %v54, %v189
    %v191 = vand.u32 %v28, 4294901760
    %v192 = vsub.f32 %v28, %v191
    %v193 = vand.u32 %v192, 4294901760
    %v194 = vsub.f32 %v192, %v193
    %v195 = vand.u32 %v194, 4294901760
    %196 = vmatmul.f32.gmra.mxu0 %v195
    %v197 = vpop.f32.mrf.mxu0
    %v198 = vadd.f32 %v54, %v197
    %v199 = vand.u32 %v29, 4294901760
    %v200 = vsub.f32 %v29, %v199
    %v201 = vand.u32 %v200, 4294901760
    %v202 = vsub.f32 %v200, %v201
    %v203 = vand.u32 %v202, 4294901760
    %204 = vmatmul.f32.gmra.mxu0 %v203
    %v205 = vpop.f32.mrf.mxu0
    %v206 = vadd.f32 %v54, %v205
    %v207 = vand.u32 %v30, 4294901760
    %v208 = vsub.f32 %v30, %v207
    %v209 = vand.u32 %v208, 4294901760
    %v210 = vsub.f32 %v208, %v209
    %v211 = vand.u32 %v210, 4294901760
    %212 = vmatmul.f32.gmra.mxu0 %v211
    %v213 = vpop.f32.mrf.mxu0
    %v214 = vadd.f32 %v54, %v213
    %215 = vdwg.mxu0
    %v216 = vand.u32 %v46, 4294901760
    %v217 = vsub.f32 %v46, %v216
    %v218 = vand.u32 %v217, 4294901760
    %v219 = vsub.f32 %v217, %v218
    %v220 = vand.u32 %v219, 4294901760
    %221 = vmatpush.msra.mxu0 %v220
    %v222 = vand.u32 %v45, 4294901760
    %v223 = vsub.f32 %v45, %v222
    %v224 = vand.u32 %v223, 4294901760
    %v225 = vsub.f32 %v223, %v224
    %v226 = vand.u32 %v225, 4294901760
    %227 = vmatpush.msra.mxu0 %v226
    %v228 = vand.u32 %v44, 4294901760
    %v229 = vsub.f32 %v44, %v228
    %v230 = vand.u32 %v229, 4294901760
    %v231 = vsub.f32 %v229, %v230
    %v232 = vand.u32 %v231, 4294901760
    %233 = vmatpush.msra.mxu0 %v232
    %v234 = vand.u32 %v43, 4294901760
    %v235 = vsub.f32 %v43, %v234
    %v236 = vand.u32 %v235, 4294901760
    %v237 = vsub.f32 %v235, %v236
    %v238 = vand.u32 %v237, 4294901760
    %239 = vmatpush.msra.mxu0 %v238
    %v240 = vand.u32 %v42, 4294901760
    %v241 = vsub.f32 %v42, %v240
    %v242 = vand.u32 %v241, 4294901760
    %v243 = vsub.f32 %v241, %v242
    %v244 = vand.u32 %v243, 4294901760
    %245 = vmatpush.msra.mxu0 %v244
    %v246 = vand.u32 %v41, 4294901760
    %v247 = vsub.f32 %v41, %v246
    %v248 = vand.u32 %v247, 4294901760
    %v249 = vsub.f32 %v247, %v248
    %v250 = vand.u32 %v249, 4294901760
    %251 = vmatpush.msra.mxu0 %v250
    %v252 = vand.u32 %v40, 4294901760
    %v253 = vsub.f32 %v40, %v252
    %v254 = vand.u32 %v253, 4294901760
    %v255 = vsub.f32 %v253, %v254
    %v256 = vand.u32 %v255, 4294901760
    %257 = vmatpush.msra.mxu0 %v256
    %v258 = vand.u32 %v39, 4294901760
    %v259 = vsub.f32 %v39, %v258
    %v260 = vand.u32 %v259, 4294901760
    %v261 = vsub.f32 %v259, %v260
    %v262 = vand.u32 %v261, 4294901760
    %263 = vmatpush.msra.mxu0 %v262
    %v264 = vand.u32 %v38, 4294901760
    %v265 = vsub.f32 %v38, %v264
    %v266 = vand.u32 %v265, 4294901760
    %v267 = vsub.f32 %v265, %v266
    %v268 = vand.u32 %v267, 4294901760
    %269 = vmatpush.msra.mxu0 %v268
    %v270 = vand.u32 %v37, 4294901760
    %v271 = vsub.f32 %v37, %v270
    %v272 = vand.u32 %v271, 4294901760
    %v273 = vsub.f32 %v271, %v272
    %v274 = vand.u32 %v273, 4294901760
    %275 = vmatpush.msra.mxu0 %v274
    %v276 = vand.u32 %v36, 4294901760
    %v277 = vsub.f32 %v36, %v276
    %v278 = vand.u32 %v277, 4294901760
    %v279 = vsub.f32 %v277, %v278
    %v280 = vand.u32 %v279, 4294901760
    %281 = vmatpush.msra.mxu0 %v280
    %v282 = vand.u32 %v35, 4294901760
    %v283 = vsub.f32 %v35, %v282
    %v284 = vand.u32 %v283, 4294901760
    %v285 = vsub.f32 %v283, %v284
    %v286 = vand.u32 %v285, 4294901760
    %287 = vmatpush.msra.mxu0 %v286
    %v288 = vand.u32 %v34, 4294901760
    %v289 = vsub.f32 %v34, %v288
    %v290 = vand.u32 %v289, 4294901760
    %v291 = vsub.f32 %v289, %v290
    %v292 = vand.u32 %v291, 4294901760
    %293 = vmatpush.msra.mxu0 %v292
    %v294 = vand.u32 %v33, 4294901760
    %v295 = vsub.f32 %v33, %v294
    %v296 = vand.u32 %v295, 4294901760
    %v297 = vsub.f32 %v295, %v296
    %v298 = vand.u32 %v297, 4294901760
    %299 = vmatpush.msra.mxu0 %v298
    %v300 = vand.u32 %v32, 4294901760
    %v301 = vsub.f32 %v32, %v300
    %v302 = vand.u32 %v301, 4294901760
    %v303 = vsub.f32 %v301, %v302
    %v304 = vand.u32 %v303, 4294901760
    %305 = vmatpush.msra.mxu0 %v304
    %v306 = vand.u32 %v31, 4294901760
    %v307 = vsub.f32 %v31, %v306
    %v308 = vand.u32 %v307, 4294901760
    %v309 = vsub.f32 %v307, %v308
    %v310 = vand.u32 %v309, 4294901760
    %311 = vmatpush.msra.mxu0 %v310
    %v312 = vand.u32 %v15, 4294901760
    %313 = vmatmul.f32.gmra.mxu0 %v312
    %v314 = vpop.f32.mrf.mxu0
    %v315 = vadd.f32 %v94, %v314
    %v316 = vand.u32 %v16, 4294901760
    %317 = vmatmul.f32.gmra.mxu0 %v316
    %v318 = vpop.f32.mrf.mxu0
    %v319 = vadd.f32 %v102, %v318
    %v320 = vand.u32 %v17, 4294901760
    %321 = vmatmul.f32.gmra.mxu0 %v320
    %v322 = vpop.f32.mrf.mxu0
    %v323 = vadd.f32 %v110, %v322
    %v324 = vand.u32 %v18, 4294901760
    %325 = vmatmul.f32.gmra.mxu0 %v324
    %v326 = vpop.f32.mrf.mxu0
    %v327 = vadd.f32 %v118, %v326
    %v328 = vand.u32 %v19, 4294901760
    %329 = vmatmul.f32.gmra.mxu0 %v328
    %v330 = vpop.f32.mrf.mxu0
    %v331 = vadd.f32 %v126, %v330
    %v332 = vand.u32 %v20, 4294901760
    %333 = vmatmul.f32.gmra.mxu0 %v332
    %v334 = vpop.f32.mrf.mxu0
    %v335 = vadd.f32 %v134, %v334
    %v336 = vand.u32 %v21, 4294901760
    %337 = vmatmul.f32.gmra.mxu0 %v336
    %v338 = vpop.f32.mrf.mxu0
    %v339 = vadd.f32 %v142, %v338
    %v340 = vand.u32 %v22, 4294901760
    %341 = vmatmul.f32.gmra.mxu0 %v340
    %v342 = vpop.f32.mrf.mxu0
    %v343 = vadd.f32 %v150, %v342
    %v344 = vand.u32 %v23, 4294901760
    %345 = vmatmul.f32.gmra.mxu0 %v344
    %v346 = vpop.f32.mrf.mxu0
    %v347 = vadd.f32 %v158, %v346
    %v348 = vand.u32 %v24, 4294901760
    %349 = vmatmul.f32.gmra.mxu0 %v348
    %v350 = vpop.f32.mrf.mxu0
    %v351 = vadd.f32 %v166, %v350
    %v352 = vand.u32 %v25, 4294901760
    %353 = vmatmul.f32.gmra.mxu0 %v352
    %v354 = vpop.f32.mrf.mxu0
    %v355 = vadd.f32 %v174, %v354
    %v356 = vand.u32 %v26, 4294901760
    %357 = vmatmul.f32.gmra.mxu0 %v356
    %v358 = vpop.f32.mrf.mxu0
    %v359 = vadd.f32 %v182, %v358
    %v360 = vand.u32 %v27, 4294901760
    %361 = vmatmul.f32.gmra.mxu0 %v360
    %v362 = vpop.f32.mrf.mxu0
    %v363 = vadd.f32 %v190, %v362
    %v364 = vand.u32 %v28, 4294901760
    %365 = vmatmul.f32.gmra.mxu0 %v364
    %v366 = vpop.f32.mrf.mxu0
    %v367 = vadd.f32 %v198, %v366
    %v368 = vand.u32 %v29, 4294901760
    %369 = vmatmul.f32.gmra.mxu0 %v368
    %v370 = vpop.f32.mrf.mxu0
    %v371 = vadd.f32 %v206, %v370
    %v372 = vand.u32 %v30, 4294901760
    %373 = vmatmul.f32.gmra.mxu0 %v372
    %v374 = vpop.f32.mrf.mxu0
    %v375 = vadd.f32 %v214, %v374
    %376 = vdwg.mxu0
    %v377 = vand.u32 %v46, 4294901760
    %v378 = vsub.f32 %v46, %v377
    %379 = vmatpush.msra.mxu0 %v378
    %v380 = vand.u32 %v45, 4294901760
    %v381 = vsub.f32 %v45, %v380
    %382 = vmatpush.msra.mxu0 %v381
    %v383 = vand.u32 %v44, 4294901760
    %v384 = vsub.f32 %v44, %v383
    %385 = vmatpush.msra.mxu0 %v384
    %v386 = vand.u32 %v43, 4294901760
    %v387 = vsub.f32 %v43, %v386
    %388 = vmatpush.msra.mxu0 %v387
    %v389 = vand.u32 %v42, 4294901760
    %v390 = vsub.f32 %v42, %v389
    %391 = vmatpush.msra.mxu0 %v390
    %v392 = vand.u32 %v41, 4294901760
    %v393 = vsub.f32 %v41, %v392
    %394 = vmatpush.msra.mxu0 %v393
    %v395 = vand.u32 %v40, 4294901760
    %v396 = vsub.f32 %v40, %v395
    %397 = vmatpush.msra.mxu0 %v396
    %v398 = vand.u32 %v39, 4294901760
    %v399 = vsub.f32 %v39, %v398
    %400 = vmatpush.msra.mxu0 %v399
    %v401 = vand.u32 %v38, 4294901760
    %v402 = vsub.f32 %v38, %v401
    %403 = vmatpush.msra.mxu0 %v402
    %v404 = vand.u32 %v37, 4294901760
    %v405 = vsub.f32 %v37, %v404
    %406 = vmatpush.msra.mxu0 %v405
    %v407 = vand.u32 %v36, 4294901760
    %v408 = vsub.f32 %v36, %v407
    %409 = vmatpush.msra.mxu0 %v408
    %v410 = vand.u32 %v35, 4294901760
    %v411 = vsub.f32 %v35, %v410
    %412 = vmatpush.msra.mxu0 %v411
    %v413 = vand.u32 %v34, 4294901760
    %v414 = vsub.f32 %v34, %v413
    %415 = vmatpush.msra.mxu0 %v414
    %v416 = vand.u32 %v33, 4294901760
    %v417 = vsub.f32 %v33, %v416
    %418 = vmatpush.msra.mxu0 %v417
    %v419 = vand.u32 %v32, 4294901760
    %v420 = vsub.f32 %v32, %v419
    %421 = vmatpush.msra.mxu0 %v420
    %v422 = vand.u32 %v31, 4294901760
    %v423 = vsub.f32 %v31, %v422
    %424 = vmatpush.msra.mxu0 %v423
    %v425 = vand.u32 %v15, 4294901760
    %v426 = vsub.f32 %v15, %v425
    %427 = vmatmul.f32.gmra.mxu0 %v426
    %v428 = vpop.f32.mrf.mxu0
    %v429 = vadd.f32 %v315, %v428
    %v430 = vand.u32 %v16, 4294901760
    %v431 = vsub.f32 %v16, %v430
    %432 = vmatmul.f32.gmra.mxu0 %v431
    %v433 = vpop.f32.mrf.mxu0
    %v434 = vadd.f32 %v319, %v433
    %v435 = vand.u32 %v17, 4294901760
    %v436 = vsub.f32 %v17, %v435
    %437 = vmatmul.f32.gmra.mxu0 %v436
    %v438 = vpop.f32.mrf.mxu0
    %v439 = vadd.f32 %v323, %v438
    %v440 = vand.u32 %v18, 4294901760
    %v441 = vsub.f32 %v18, %v440
    %442 = vmatmul.f32.gmra.mxu0 %v441
    %v443 = vpop.f32.mrf.mxu0
    %v444 = vadd.f32 %v327, %v443
    %v445 = vand.u32 %v19, 4294901760
    %v446 = vsub.f32 %v19, %v445
    %447 = vmatmul.f32.gmra.mxu0 %v446
    %v448 = vpop.f32.mrf.mxu0
    %v449 = vadd.f32 %v331, %v448
    %v450 = vand.u32 %v20, 4294901760
    %v451 = vsub.f32 %v20, %v450
    %452 = vmatmul.f32.gmra.mxu0 %v451
    %v453 = vpop.f32.mrf.mxu0
    %v454 = vadd.f32 %v335, %v453
    %v455 = vand.u32 %v21, 4294901760
    %v456 = vsub.f32 %v21, %v455
    %457 = vmatmul.f32.gmra.mxu0 %v456
    %v458 = vpop.f32.mrf.mxu0
    %v459 = vadd.f32 %v339, %v458
    %v460 = vand.u32 %v22, 4294901760
    %v461 = vsub.f32 %v22, %v460
    %462 = vmatmul.f32.gmra.mxu0 %v461
    %v463 = vpop.f32.mrf.mxu0
    %v464 = vadd.f32 %v343, %v463
    %v465 = vand.u32 %v23, 4294901760
    %v466 = vsub.f32 %v23, %v465
    %467 = vmatmul.f32.gmra.mxu0 %v466
    %v468 = vpop.f32.mrf.mxu0
    %v469 = vadd.f32 %v347, %v468
    %v470 = vand.u32 %v24, 4294901760
    %v471 = vsub.f32 %v24, %v470
    %472 = vmatmul.f32.gmra.mxu0 %v471
    %v473 = vpop.f32.mrf.mxu0
    %v474 = vadd.f32 %v351, %v473
    %v475 = vand.u32 %v25, 4294901760
    %v476 = vsub.f32 %v25, %v475
    %477 = vmatmul.f32.gmra.mxu0 %v476
    %v478 = vpop.f32.mrf.mxu0
    %v479 = vadd.f32 %v355, %v478
    %v480 = vand.u32 %v26, 4294901760
    %v481 = vsub.f32 %v26, %v480
    %482 = vmatmul.f32.gmra.mxu0 %v481
    %v483 = vpop.f32.mrf.mxu0
    %v484 = vadd.f32 %v359, %v483
    %v485 = vand.u32 %v27, 4294901760
    %v486 = vsub.f32 %v27, %v485
    %487 = vmatmul.f32.gmra.mxu0 %v486
    %v488 = vpop.f32.mrf.mxu0
    %v489 = vadd.f32 %v363, %v488
    %v490 = vand.u32 %v28, 4294901760
    %v491 = vsub.f32 %v28, %v490
    %492 = vmatmul.f32.gmra.mxu0 %v491
    %v493 = vpop.f32.mrf.mxu0
    %v494 = vadd.f32 %v367, %v493
    %v495 = vand.u32 %v29, 4294901760
    %v496 = vsub.f32 %v29, %v495
    %497 = vmatmul.f32.gmra.mxu0 %v496
    %v498 = vpop.f32.mrf.mxu0
    %v499 = vadd.f32 %v371, %v498
    %v500 = vand.u32 %v30, 4294901760
    %v501 = vsub.f32 %v30, %v500
    %502 = vmatmul.f32.gmra.mxu0 %v501
    %v503 = vpop.f32.mrf.mxu0
    %v504 = vadd.f32 %v375, %v503
    %505 = vdwg.mxu0
    %v506 = vand.u32 %v46, 4294901760
    %507 = vmatpush.msra.mxu0 %v506
    %v508 = vand.u32 %v45, 4294901760
    %509 = vmatpush.msra.mxu0 %v508
    %v510 = vand.u32 %v44, 4294901760
    %511 = vmatpush.msra.mxu0 %v510
    %v512 = vand.u32 %v43, 4294901760
    %513 = vmatpush.msra.mxu0 %v512
    %v514 = vand.u32 %v42, 4294901760
    %515 = vmatpush.msra.mxu0 %v514
    %v516 = vand.u32 %v41, 4294901760
    %517 = vmatpush.msra.mxu0 %v516
    %v518 = vand.u32 %v40, 4294901760
    %519 = vmatpush.msra.mxu0 %v518
    %v520 = vand.u32 %v39, 4294901760
    %521 = vmatpush.msra.mxu0 %v520
    %v522 = vand.u32 %v38, 4294901760
    %523 = vmatpush.msra.mxu0 %v522
    %v524 = vand.u32 %v37, 4294901760
    %525 = vmatpush.msra.mxu0 %v524
    %v526 = vand.u32 %v36, 4294901760
    %527 = vmatpush.msra.mxu0 %v526
    %v528 = vand.u32 %v35, 4294901760
    %529 = vmatpush.msra.mxu0 %v528
    %v530 = vand.u32 %v34, 4294901760
    %531 = vmatpush.msra.mxu0 %v530
    %v532 = vand.u32 %v33, 4294901760
    %533 = vmatpush.msra.mxu0 %v532
    %v534 = vand.u32 %v32, 4294901760
    %535 = vmatpush.msra.mxu0 %v534
    %v536 = vand.u32 %v31, 4294901760
    %537 = vmatpush.msra.mxu0 %v536
    %v538 = vand.u32 %v15, 4294901760
    %v539 = vsub.f32 %v15, %v538
    %v540 = vand.u32 %v539, 4294901760
    %541 = vmatmul.f32.gmra.mxu0 %v540
    %v542 = vpop.f32.mrf.mxu0
    %v543 = vadd.f32 %v429, %v542
    %v544 = vand.u32 %v16, 4294901760
    %v545 = vsub.f32 %v16, %v544
    %v546 = vand.u32 %v545, 4294901760
    %547 = vmatmul.f32.gmra.mxu0 %v546
    %v548 = vpop.f32.mrf.mxu0
    %v549 = vadd.f32 %v434, %v548
    %v550 = vand.u32 %v17, 4294901760
    %v551 = vsub.f32 %v17, %v550
    %v552 = vand.u32 %v551, 4294901760
    %553 = vmatmul.f32.gmra.mxu0 %v552
    %v554 = vpop.f32.mrf.mxu0
    %v555 = vadd.f32 %v439, %v554
    %v556 = vand.u32 %v18, 4294901760
    %v557 = vsub.f32 %v18, %v556
    %v558 = vand.u32 %v557, 4294901760
    %559 = vmatmul.f32.gmra.mxu0 %v558
    %v560 = vpop.f32.mrf.mxu0
    %v561 = vadd.f32 %v444, %v560
    %v562 = vand.u32 %v19, 4294901760
    %v563 = vsub.f32 %v19, %v562
    %v564 = vand.u32 %v563, 4294901760
    %565 = vmatmul.f32.gmra.mxu0 %v564
    %v566 = vpop.f32.mrf.mxu0
    %v567 = vadd.f32 %v449, %v566
    %v568 = vand.u32 %v20, 4294901760
    %v569 = vsub.f32 %v20, %v568
    %v570 = vand.u32 %v569, 4294901760
    %571 = vmatmul.f32.gmra.mxu0 %v570
    %v572 = vpop.f32.mrf.mxu0
    %v573 = vadd.f32 %v454, %v572
    %v574 = vand.u32 %v21, 4294901760
    %v575 = vsub.f32 %v21, %v574
    %v576 = vand.u32 %v575, 4294901760
    %577 = vmatmul.f32.gmra.mxu0 %v576
    %v578 = vpop.f32.mrf.mxu0
    %v579 = vadd.f32 %v459, %v578
    %v580 = vand.u32 %v22, 4294901760
    %v581 = vsub.f32 %v22, %v580
    %v582 = vand.u32 %v581, 4294901760
    %583 = vmatmul.f32.gmra.mxu0 %v582
    %v584 = vpop.f32.mrf.mxu0
    %v585 = vadd.f32 %v464, %v584
    %v586 = vand.u32 %v23, 4294901760
    %v587 = vsub.f32 %v23, %v586
    %v588 = vand.u32 %v587, 4294901760
    %589 = vmatmul.f32.gmra.mxu0 %v588
    %v590 = vpop.f32.mrf.mxu0
    %v591 = vadd.f32 %v469, %v590
    %v592 = vand.u32 %v24, 4294901760
    %v593 = vsub.f32 %v24, %v592
    %v594 = vand.u32 %v593, 4294901760
    %595 = vmatmul.f32.gmra.mxu0 %v594
    %v596 = vpop.f32.mrf.mxu0
    %v597 = vadd.f32 %v474, %v596
    %v598 = vand.u32 %v25, 4294901760
    %v599 = vsub.f32 %v25, %v598
    %v600 = vand.u32 %v599, 4294901760
    %601 = vmatmul.f32.gmra.mxu0 %v600
    %v602 = vpop.f32.mrf.mxu0
    %v603 = vadd.f32 %v479, %v602
    %v604 = vand.u32 %v26, 4294901760
    %v605 = vsub.f32 %v26, %v604
    %v606 = vand.u32 %v605, 4294901760
    %607 = vmatmul.f32.gmra.mxu0 %v606
    %v608 = vpop.f32.mrf.mxu0
    %v609 = vadd.f32 %v484, %v608
    %v610 = vand.u32 %v27, 4294901760
    %v611 = vsub.f32 %v27, %v610
    %v612 = vand.u32 %v611, 4294901760
    %613 = vmatmul.f32.gmra.mxu0 %v612
    %v614 = vpop.f32.mrf.mxu0
    %v615 = vadd.f32 %v489, %v614
    %v616 = vand.u32 %v28, 4294901760
    %v617 = vsub.f32 %v28, %v616
    %v618 = vand.u32 %v617, 4294901760
    %619 = vmatmul.f32.gmra.mxu0 %v618
    %v620 = vpop.f32.mrf.mxu0
    %v621 = vadd.f32 %v494, %v620
    %v622 = vand.u32 %v29, 4294901760
    %v623 = vsub.f32 %v29, %v622
    %v624 = vand.u32 %v623, 4294901760
    %625 = vmatmul.f32.gmra.mxu0 %v624
    %v626 = vpop.f32.mrf.mxu0
    %v627 = vadd.f32 %v499, %v626
    %v628 = vand.u32 %v30, 4294901760
    %v629 = vsub.f32 %v30, %v628
    %v630 = vand.u32 %v629, 4294901760
    %631 = vmatmul.f32.gmra.mxu0 %v630
    %v632 = vpop.f32.mrf.mxu0
    %v633 = vadd.f32 %v504, %v632
    %634 = vdwg.mxu0
    %v635 = vand.u32 %v46, 4294901760
    %v636 = vsub.f32 %v46, %v635
    %v637 = vand.u32 %v636, 4294901760
    %638 = vmatpush.msra.mxu0 %v637
    %v639 = vand.u32 %v45, 4294901760
    %v640 = vsub.f32 %v45, %v639
    %v641 = vand.u32 %v640, 4294901760
    %642 = vmatpush.msra.mxu0 %v641
    %v643 = vand.u32 %v44, 4294901760
    %v644 = vsub.f32 %v44, %v643
    %v645 = vand.u32 %v644, 4294901760
    %646 = vmatpush.msra.mxu0 %v645
    %v647 = vand.u32 %v43, 4294901760
    %v648 = vsub.f32 %v43, %v647
    %v649 = vand.u32 %v648, 4294901760
    %650 = vmatpush.msra.mxu0 %v649
    %v651 = vand.u32 %v42, 4294901760
    %v652 = vsub.f32 %v42, %v651
    %v653 = vand.u32 %v652, 4294901760
    %654 = vmatpush.msra.mxu0 %v653
    %v655 = vand.u32 %v41, 4294901760
    %v656 = vsub.f32 %v41, %v655
    %v657 = vand.u32 %v656, 4294901760
    %658 = vmatpush.msra.mxu0 %v657
    %v659 = vand.u32 %v40, 4294901760
    %v660 = vsub.f32 %v40, %v659
    %v661 = vand.u32 %v660, 4294901760
    %662 = vmatpush.msra.mxu0 %v661
    %v663 = vand.u32 %v39, 4294901760
    %v664 = vsub.f32 %v39, %v663
    %v665 = vand.u32 %v664, 4294901760
    %666 = vmatpush.msra.mxu0 %v665
    %v667 = vand.u32 %v38, 4294901760
    %v668 = vsub.f32 %v38, %v667
    %v669 = vand.u32 %v668, 4294901760
    %670 = vmatpush.msra.mxu0 %v669
    %v671 = vand.u32 %v37, 4294901760
    %v672 = vsub.f32 %v37, %v671
    %v673 = vand.u32 %v672, 4294901760
    %674 = vmatpush.msra.mxu0 %v673
    %v675 = vand.u32 %v36, 4294901760
    %v676 = vsub.f32 %v36, %v675
    %v677 = vand.u32 %v676, 4294901760
    %678 = vmatpush.msra.mxu0 %v677
    %v679 = vand.u32 %v35, 4294901760
    %v680 = vsub.f32 %v35, %v679
    %v681 = vand.u32 %v680, 4294901760
    %682 = vmatpush.msra.mxu0 %v681
    %v683 = vand.u32 %v34, 4294901760
    %v684 = vsub.f32 %v34, %v683
    %v685 = vand.u32 %v684, 4294901760
    %686 = vmatpush.msra.mxu0 %v685
    %v687 = vand.u32 %v33, 4294901760
    %v688 = vsub.f32 %v33, %v687
    %v689 = vand.u32 %v688, 4294901760
    %690 = vmatpush.msra.mxu0 %v689
    %v691 = vand.u32 %v32, 4294901760
    %v692 = vsub.f32 %v32, %v691
    %v693 = vand.u32 %v692, 4294901760
    %694 = vmatpush.msra.mxu0 %v693
    %v695 = vand.u32 %v31, 4294901760
    %v696 = vsub.f32 %v31, %v695
    %v697 = vand.u32 %v696, 4294901760
    %698 = vmatpush.msra.mxu0 %v697
    %v699 = vand.u32 %v15, 4294901760
    %700 = vmatmul.f32.gmra.mxu0 %v699
    %v701 = vpop.f32.mrf.mxu0
    %v702 = vadd.f32 %v543, %v701
    %v703 = vand.u32 %v16, 4294901760
    %704 = vmatmul.f32.gmra.mxu0 %v703
    %v705 = vpop.f32.mrf.mxu0
    %v706 = vadd.f32 %v549, %v705
    %v707 = vand.u32 %v17, 4294901760
    %708 = vmatmul.f32.gmra.mxu0 %v707
    %v709 = vpop.f32.mrf.mxu0
    %v710 = vadd.f32 %v555, %v709
    %v711 = vand.u32 %v18, 4294901760
    %712 = vmatmul.f32.gmra.mxu0 %v711
    %v713 = vpop.f32.mrf.mxu0
    %v714 = vadd.f32 %v561, %v713
    %v715 = vand.u32 %v19, 4294901760
    %716 = vmatmul.f32.gmra.mxu0 %v715
    %v717 = vpop.f32.mrf.mxu0
    %v718 = vadd.f32 %v567, %v717
    %v719 = vand.u32 %v20, 4294901760
    %720 = vmatmul.f32.gmra.mxu0 %v719
    %v721 = vpop.f32.mrf.mxu0
    %v722 = vadd.f32 %v573, %v721
    %v723 = vand.u32 %v21, 4294901760
    %724 = vmatmul.f32.gmra.mxu0 %v723
    %v725 = vpop.f32.mrf.mxu0
    %v726 = vadd.f32 %v579, %v725
    %v727 = vand.u32 %v22, 4294901760
    %728 = vmatmul.f32.gmra.mxu0 %v727
    %v729 = vpop.f32.mrf.mxu0
    %v730 = vadd.f32 %v585, %v729
    %v731 = vand.u32 %v23, 4294901760
    %732 = vmatmul.f32.gmra.mxu0 %v731
    %v733 = vpop.f32.mrf.mxu0
    %v734 = vadd.f32 %v591, %v733
    %v735 = vand.u32 %v24, 4294901760
    %736 = vmatmul.f32.gmra.mxu0 %v735
    %v737 = vpop.f32.mrf.mxu0
    %v738 = vadd.f32 %v597, %v737
    %v739 = vand.u32 %v25, 4294901760
    %740 = vmatmul.f32.gmra.mxu0 %v739
    %v741 = vpop.f32.mrf.mxu0
    %v742 = vadd.f32 %v603, %v741
    %v743 = vand.u32 %v26, 4294901760
    %744 = vmatmul.f32.gmra.mxu0 %v743
    %v745 = vpop.f32.mrf.mxu0
    %v746 = vadd.f32 %v609, %v745
    %v747 = vand.u32 %v27, 4294901760
    %748 = vmatmul.f32.gmra.mxu0 %v747
    %v749 = vpop.f32.mrf.mxu0
    %v750 = vadd.f32 %v615, %v749
    %v751 = vand.u32 %v28, 4294901760
    %752 = vmatmul.f32.gmra.mxu0 %v751
    %v753 = vpop.f32.mrf.mxu0
    %v754 = vadd.f32 %v621, %v753
    %v755 = vand.u32 %v29, 4294901760
    %756 = vmatmul.f32.gmra.mxu0 %v755
    %v757 = vpop.f32.mrf.mxu0
    %v758 = vadd.f32 %v627, %v757
    %v759 = vand.u32 %v30, 4294901760
    %760 = vmatmul.f32.gmra.mxu0 %v759
    %v761 = vpop.f32.mrf.mxu0
    %v762 = vadd.f32 %v633, %v761
    %763 = vdwg.mxu0
    %v764 = vand.u32 %v46, 4294901760
    %765 = vmatpush.msra.mxu0 %v764
    %v766 = vand.u32 %v45, 4294901760
    %767 = vmatpush.msra.mxu0 %v766
    %v768 = vand.u32 %v44, 4294901760
    %769 = vmatpush.msra.mxu0 %v768
    %v770 = vand.u32 %v43, 4294901760
    %771 = vmatpush.msra.mxu0 %v770
    %v772 = vand.u32 %v42, 4294901760
    %773 = vmatpush.msra.mxu0 %v772
    %v774 = vand.u32 %v41, 4294901760
    %775 = vmatpush.msra.mxu0 %v774
    %v776 = vand.u32 %v40, 4294901760
    %777 = vmatpush.msra.mxu0 %v776
    %v778 = vand.u32 %v39, 4294901760
    %779 = vmatpush.msra.mxu0 %v778
    %v780 = vand.u32 %v38, 4294901760
    %781 = vmatpush.msra.mxu0 %v780
    %v782 = vand.u32 %v37, 4294901760
    %783 = vmatpush.msra.mxu0 %v782
    %v784 = vand.u32 %v36, 4294901760
    %785 = vmatpush.msra.mxu0 %v784
    %v786 = vand.u32 %v35, 4294901760
    %787 = vmatpush.msra.mxu0 %v786
    %v788 = vand.u32 %v34, 4294901760
    %789 = vmatpush.msra.mxu0 %v788
    %v790 = vand.u32 %v33, 4294901760
    %791 = vmatpush.msra.mxu0 %v790
    %v792 = vand.u32 %v32, 4294901760
    %793 = vmatpush.msra.mxu0 %v792
    %v794 = vand.u32 %v31, 4294901760
    %795 = vmatpush.msra.mxu0 %v794
    %v796 = vand.u32 %v15, 4294901760
    %797 = vmatmul.f32.gmra.mxu0 %v796
    %v798 = vpop.f32.mrf.mxu0
    %v799 = vadd.f32 %v702, %v798
    %v800 = vand.u32 %v16, 4294901760
    %801 = vmatmul.f32.gmra.mxu0 %v800
    %v802 = vpop.f32.mrf.mxu0
    %v803 = vadd.f32 %v706, %v802
    %v804 = vand.u32 %v17, 4294901760
    %805 = vmatmul.f32.gmra.mxu0 %v804
    %v806 = vpop.f32.mrf.mxu0
    %v807 = vadd.f32 %v710, %v806
    %v808 = vand.u32 %v18, 4294901760
    %809 = vmatmul.f32.gmra.mxu0 %v808
    %v810 = vpop.f32.mrf.mxu0
    %v811 = vadd.f32 %v714, %v810
    %v812 = vand.u32 %v19, 4294901760
    %813 = vmatmul.f32.gmra.mxu0 %v812
    %v814 = vpop.f32.mrf.mxu0
    %v815 = vadd.f32 %v718, %v814
    %v816 = vand.u32 %v20, 4294901760
    %817 = vmatmul.f32.gmra.mxu0 %v816
    %v818 = vpop.f32.mrf.mxu0
    %v819 = vadd.f32 %v722, %v818
    %v820 = vand.u32 %v21, 4294901760
    %821 = vmatmul.f32.gmra.mxu0 %v820
    %v822 = vpop.f32.mrf.mxu0
    %v823 = vadd.f32 %v726, %v822
    %v824 = vand.u32 %v22, 4294901760
    %825 = vmatmul.f32.gmra.mxu0 %v824
    %v826 = vpop.f32.mrf.mxu0
    %v827 = vadd.f32 %v730, %v826
    %v828 = vand.u32 %v23, 4294901760
    %829 = vmatmul.f32.gmra.mxu0 %v828
    %v830 = vpop.f32.mrf.mxu0
    %v831 = vadd.f32 %v734, %v830
    %v832 = vand.u32 %v24, 4294901760
    %833 = vmatmul.f32.gmra.mxu0 %v832
    %v834 = vpop.f32.mrf.mxu0
    %v835 = vadd.f32 %v738, %v834
    %v836 = vand.u32 %v25, 4294901760
    %837 = vmatmul.f32.gmra.mxu0 %v836
    %v838 = vpop.f32.mrf.mxu0
    %v839 = vadd.f32 %v742, %v838
    %v840 = vand.u32 %v26, 4294901760
    %841 = vmatmul.f32.gmra.mxu0 %v840
    %v842 = vpop.f32.mrf.mxu0
    %v843 = vadd.f32 %v746, %v842
    %v844 = vand.u32 %v27, 4294901760
    %845 = vmatmul.f32.gmra.mxu0 %v844
    %v846 = vpop.f32.mrf.mxu0
    %v847 = vadd.f32 %v750, %v846
    %v848 = vand.u32 %v28, 4294901760
    %849 = vmatmul.f32.gmra.mxu0 %v848
    %v850 = vpop.f32.mrf.mxu0
    %v851 = vadd.f32 %v754, %v850
    %v852 = vand.u32 %v29, 4294901760
    %853 = vmatmul.f32.gmra.mxu0 %v852
    %v854 = vpop.f32.mrf.mxu0
    %v855 = vadd.f32 %v758, %v854
    %v856 = vand.u32 %v30, 4294901760
    %857 = vmatmul.f32.gmra.mxu0 %v856
    %v858 = vpop.f32.mrf.mxu0
    %v859 = vadd.f32 %v762, %v858
    %860 = vdwg.mxu0
    %v861 = vmax.f32 %v799, 0.0
    %v862 = vmax.f32 %v803, 0.0
    %v863 = vmax.f32 %v807, 0.0
    %v864 = vmax.f32 %v811, 0.0
    %v865 = vmax.f32 %v815, 0.0
    %v866 = vmax.f32 %v819, 0.0
    %v867 = vmax.f32 %v823, 0.0
    %v868 = vmax.f32 %v827, 0.0
    %v869 = vmax.f32 %v831, 0.0
    %v870 = vmax.f32 %v835, 0.0
    %v871 = vmax.f32 %v839, 0.0
    %v872 = vmax.f32 %v843, 0.0
    %v873 = vmax.f32 %v847, 0.0
    %v874 = vmax.f32 %v851, 0.0
    %v875 = vmax.f32 %v855, 0.0
    %v876 = vmax.f32 %v859, 0.0
    %v877 = vperm.slane %v52, 0
    %vm878 = vcmask 130048
    %v880 = vsel %vm878, %v861, 0
    %v883 = vsel %vm878, %v862, 0
    %v886 = vsel %vm878, %v863, 0
    %v889 = vsel %vm878, %v864, 0
    %v892 = vsel %vm878, %v865, 0
    %v895 = vsel %vm878, %v866, 0
    %v898 = vsel %vm878, %v867, 0
    %v901 = vsel %vm878, %v868, 0
    %v904 = vsel %vm878, %v869, 0
    %v907 = vsel %vm878, %v870, 0
    %v910 = vsel %vm878, %v871, 0
    %v913 = vsel %vm878, %v872, 0
    %v916 = vsel %vm878, %v873, 0
    %v919 = vsel %vm878, %v874, 0
    %v922 = vsel %vm878, %v875, 0
    %v925 = vsel %vm878, %v876, 0
    %927 = vmatpush.msra.mxu0 0.0
    %928 = vmatpush.msra.mxu0 0.0
    %929 = vmatpush.msra.mxu0 0.0
    %930 = vmatpush.msra.mxu0 0.0
    %931 = vmatpush.msra.mxu0 0.0
    %932 = vmatpush.msra.mxu0 0.0
    %933 = vmatpush.msra.mxu0 0.0
    %934 = vmatpush.msra.mxu0 0.0
    %935 = vmatpush.msra.mxu0 0.0
    %936 = vmatpush.msra.mxu0 0.0
    %937 = vmatpush.msra.mxu0 0.0
    %938 = vmatpush.msra.mxu0 0.0
    %939 = vmatpush.msra.mxu0 0.0
    %940 = vmatpush.msra.mxu0 0.0
    %v941 = vand.u32 %v48, 4294901760
    %942 = vmatpush.msra.mxu0 %v941
    %v943 = vand.u32 %v47, 4294901760
    %944 = vmatpush.msra.mxu0 %v943
    %v945 = vand.u32 %v880, 4294901760
    %v946 = vsub.f32 %v880, %v945
    %v947 = vand.u32 %v946, 4294901760
    %v948 = vsub.f32 %v946, %v947
    %v949 = vand.u32 %v948, 4294901760
    %950 = vmatmul.f32.gmra.mxu0 %v949
    %v951 = vpop.f32.mrf.mxu0
    %v952 = vadd.f32 %v877, %v951
    %v953 = vand.u32 %v883, 4294901760
    %v954 = vsub.f32 %v883, %v953
    %v955 = vand.u32 %v954, 4294901760
    %v956 = vsub.f32 %v954, %v955
    %v957 = vand.u32 %v956, 4294901760
    %958 = vmatmul.f32.gmra.mxu0 %v957
    %v959 = vpop.f32.mrf.mxu0
    %v960 = vadd.f32 %v877, %v959
    %v961 = vand.u32 %v886, 4294901760
    %v962 = vsub.f32 %v886, %v961
    %v963 = vand.u32 %v962, 4294901760
    %v964 = vsub.f32 %v962, %v963
    %v965 = vand.u32 %v964, 4294901760
    %966 = vmatmul.f32.gmra.mxu0 %v965
    %v967 = vpop.f32.mrf.mxu0
    %v968 = vadd.f32 %v877, %v967
    %v969 = vand.u32 %v889, 4294901760
    %v970 = vsub.f32 %v889, %v969
    %v971 = vand.u32 %v970, 4294901760
    %v972 = vsub.f32 %v970, %v971
    %v973 = vand.u32 %v972, 4294901760
    %974 = vmatmul.f32.gmra.mxu0 %v973
    %v975 = vpop.f32.mrf.mxu0
    %v976 = vadd.f32 %v877, %v975
    %v977 = vand.u32 %v892, 4294901760
    %v978 = vsub.f32 %v892, %v977
    %v979 = vand.u32 %v978, 4294901760
    %v980 = vsub.f32 %v978, %v979
    %v981 = vand.u32 %v980, 4294901760
    %982 = vmatmul.f32.gmra.mxu0 %v981
    %v983 = vpop.f32.mrf.mxu0
    %v984 = vadd.f32 %v877, %v983
    %v985 = vand.u32 %v895, 4294901760
    %v986 = vsub.f32 %v895, %v985
    %v987 = vand.u32 %v986, 4294901760
    %v988 = vsub.f32 %v986, %v987
    %v989 = vand.u32 %v988, 4294901760
    %990 = vmatmul.f32.gmra.mxu0 %v989
    %v991 = vpop.f32.mrf.mxu0
    %v992 = vadd.f32 %v877, %v991
    %v993 = vand.u32 %v898, 4294901760
    %v994 = vsub.f32 %v898, %v993
    %v995 = vand.u32 %v994, 4294901760
    %v996 = vsub.f32 %v994, %v995
    %v997 = vand.u32 %v996, 4294901760
    %998 = vmatmul.f32.gmra.mxu0 %v997
    %v999 = vpop.f32.mrf.mxu0
    %v1000 = vadd.f32 %v877, %v999
    %v1001 = vand.u32 %v901, 4294901760
    %v1002 = vsub.f32 %v901, %v1001
    %v1003 = vand.u32 %v1002, 4294901760
    %v1004 = vsub.f32 %v1002, %v1003
    %v1005 = vand.u32 %v1004, 4294901760
    %1006 = vmatmul.f32.gmra.mxu0 %v1005
    %v1007 = vpop.f32.mrf.mxu0
    %v1008 = vadd.f32 %v877, %v1007
    %v1009 = vand.u32 %v904, 4294901760
    %v1010 = vsub.f32 %v904, %v1009
    %v1011 = vand.u32 %v1010, 4294901760
    %v1012 = vsub.f32 %v1010, %v1011
    %v1013 = vand.u32 %v1012, 4294901760
    %1014 = vmatmul.f32.gmra.mxu0 %v1013
    %v1015 = vpop.f32.mrf.mxu0
    %v1016 = vadd.f32 %v877, %v1015
    %v1017 = vand.u32 %v907, 4294901760
    %v1018 = vsub.f32 %v907, %v1017
    %v1019 = vand.u32 %v1018, 4294901760
    %v1020 = vsub.f32 %v1018, %v1019
    %v1021 = vand.u32 %v1020, 4294901760
    %1022 = vmatmul.f32.gmra.mxu0 %v1021
    %v1023 = vpop.f32.mrf.mxu0
    %v1024 = vadd.f32 %v877, %v1023
    %v1025 = vand.u32 %v910, 4294901760
    %v1026 = vsub.f32 %v910, %v1025
    %v1027 = vand.u32 %v1026, 4294901760
    %v1028 = vsub.f32 %v1026, %v1027
    %v1029 = vand.u32 %v1028, 4294901760
    %1030 = vmatmul.f32.gmra.mxu0 %v1029
    %v1031 = vpop.f32.mrf.mxu0
    %v1032 = vadd.f32 %v877, %v1031
    %v1033 = vand.u32 %v913, 4294901760
    %v1034 = vsub.f32 %v913, %v1033
    %v1035 = vand.u32 %v1034, 4294901760
    %v1036 = vsub.f32 %v1034, %v1035
    %v1037 = vand.u32 %v1036, 4294901760
    %1038 = vmatmul.f32.gmra.mxu0 %v1037
    %v1039 = vpop.f32.mrf.mxu0
    %v1040 = vadd.f32 %v877, %v1039
    %v1041 = vand.u32 %v916, 4294901760
    %v1042 = vsub.f32 %v916, %v1041
    %v1043 = vand.u32 %v1042, 4294901760
    %v1044 = vsub.f32 %v1042, %v1043
    %v1045 = vand.u32 %v1044, 4294901760
    %1046 = vmatmul.f32.gmra.mxu0 %v1045
    %v1047 = vpop.f32.mrf.mxu0
    %v1048 = vadd.f32 %v877, %v1047
    %v1049 = vand.u32 %v919, 4294901760
    %v1050 = vsub.f32 %v919, %v1049
    %v1051 = vand.u32 %v1050, 4294901760
    %v1052 = vsub.f32 %v1050, %v1051
    %v1053 = vand.u32 %v1052, 4294901760
    %1054 = vmatmul.f32.gmra.mxu0 %v1053
    %v1055 = vpop.f32.mrf.mxu0
    %v1056 = vadd.f32 %v877, %v1055
    %v1057 = vand.u32 %v922, 4294901760
    %v1058 = vsub.f32 %v922, %v1057
    %v1059 = vand.u32 %v1058, 4294901760
    %v1060 = vsub.f32 %v1058, %v1059
    %v1061 = vand.u32 %v1060, 4294901760
    %1062 = vmatmul.f32.gmra.mxu0 %v1061
    %v1063 = vpop.f32.mrf.mxu0
    %v1064 = vadd.f32 %v877, %v1063
    %v1065 = vand.u32 %v925, 4294901760
    %v1066 = vsub.f32 %v925, %v1065
    %v1067 = vand.u32 %v1066, 4294901760
    %v1068 = vsub.f32 %v1066, %v1067
    %v1069 = vand.u32 %v1068, 4294901760
    %1070 = vmatmul.f32.gmra.mxu0 %v1069
    %v1071 = vpop.f32.mrf.mxu0
    %v1072 = vadd.f32 %v877, %v1071
    %1073 = vdwg.mxu0
    %1074 = vmatpush.msra.mxu0 0.0
    %1075 = vmatpush.msra.mxu0 0.0
    %1076 = vmatpush.msra.mxu0 0.0
    %1077 = vmatpush.msra.mxu0 0.0
    %1078 = vmatpush.msra.mxu0 0.0
    %1079 = vmatpush.msra.mxu0 0.0
    %1080 = vmatpush.msra.mxu0 0.0
    %1081 = vmatpush.msra.mxu0 0.0
    %1082 = vmatpush.msra.mxu0 0.0
    %1083 = vmatpush.msra.mxu0 0.0
    %1084 = vmatpush.msra.mxu0 0.0
    %1085 = vmatpush.msra.mxu0 0.0
    %1086 = vmatpush.msra.mxu0 0.0
    %1087 = vmatpush.msra.mxu0 0.0
    %v1088 = vand.u32 %v48, 4294901760
    %v1089 = vsub.f32 %v48, %v1088
    %v1090 = vand.u32 %v1089, 4294901760
    %v1091 = vsub.f32 %v1089, %v1090
    %v1092 = vand.u32 %v1091, 4294901760
    %1093 = vmatpush.msra.mxu0 %v1092
    %v1094 = vand.u32 %v47, 4294901760
    %v1095 = vsub.f32 %v47, %v1094
    %v1096 = vand.u32 %v1095, 4294901760
    %v1097 = vsub.f32 %v1095, %v1096
    %v1098 = vand.u32 %v1097, 4294901760
    %1099 = vmatpush.msra.mxu0 %v1098
    %v1100 = vand.u32 %v880, 4294901760
    %1101 = vmatmul.f32.gmra.mxu0 %v1100
    %v1102 = vpop.f32.mrf.mxu0
    %v1103 = vadd.f32 %v952, %v1102
    %v1104 = vand.u32 %v883, 4294901760
    %1105 = vmatmul.f32.gmra.mxu0 %v1104
    %v1106 = vpop.f32.mrf.mxu0
    %v1107 = vadd.f32 %v960, %v1106
    %v1108 = vand.u32 %v886, 4294901760
    %1109 = vmatmul.f32.gmra.mxu0 %v1108
    %v1110 = vpop.f32.mrf.mxu0
    %v1111 = vadd.f32 %v968, %v1110
    %v1112 = vand.u32 %v889, 4294901760
    %1113 = vmatmul.f32.gmra.mxu0 %v1112
    %v1114 = vpop.f32.mrf.mxu0
    %v1115 = vadd.f32 %v976, %v1114
    %v1116 = vand.u32 %v892, 4294901760
    %1117 = vmatmul.f32.gmra.mxu0 %v1116
    %v1118 = vpop.f32.mrf.mxu0
    %v1119 = vadd.f32 %v984, %v1118
    %v1120 = vand.u32 %v895, 4294901760
    %1121 = vmatmul.f32.gmra.mxu0 %v1120
    %v1122 = vpop.f32.mrf.mxu0
    %v1123 = vadd.f32 %v992, %v1122
    %v1124 = vand.u32 %v898, 4294901760
    %1125 = vmatmul.f32.gmra.mxu0 %v1124
    %v1126 = vpop.f32.mrf.mxu0
    %v1127 = vadd.f32 %v1000, %v1126
    %v1128 = vand.u32 %v901, 4294901760
    %1129 = vmatmul.f32.gmra.mxu0 %v1128
    %v1130 = vpop.f32.mrf.mxu0
    %v1131 = vadd.f32 %v1008, %v1130
    %v1132 = vand.u32 %v904, 4294901760
    %1133 = vmatmul.f32.gmra.mxu0 %v1132
    %v1134 = vpop.f32.mrf.mxu0
    %v1135 = vadd.f32 %v1016, %v1134
    %v1136 = vand.u32 %v907, 4294901760
    %1137 = vmatmul.f32.gmra.mxu0 %v1136
    %v1138 = vpop.f32.mrf.mxu0
    %v1139 = vadd.f32 %v1024, %v1138
    %v1140 = vand.u32 %v910, 4294901760
    %1141 = vmatmul.f32.gmra.mxu0 %v1140
    %v1142 = vpop.f32.mrf.mxu0
    %v1143 = vadd.f32 %v1032, %v1142
    %v1144 = vand.u32 %v913, 4294901760
    %1145 = vmatmul.f32.gmra.mxu0 %v1144
    %v1146 = vpop.f32.mrf.mxu0
    %v1147 = vadd.f32 %v1040, %v1146
    %v1148 = vand.u32 %v916, 4294901760
    %1149 = vmatmul.f32.gmra.mxu0 %v1148
    %v1150 = vpop.f32.mrf.mxu0
    %v1151 = vadd.f32 %v1048, %v1150
    %v1152 = vand.u32 %v919, 4294901760
    %1153 = vmatmul.f32.gmra.mxu0 %v1152
    %v1154 = vpop.f32.mrf.mxu0
    %v1155 = vadd.f32 %v1056, %v1154
    %v1156 = vand.u32 %v922, 4294901760
    %1157 = vmatmul.f32.gmra.mxu0 %v1156
    %v1158 = vpop.f32.mrf.mxu0
    %v1159 = vadd.f32 %v1064, %v1158
    %v1160 = vand.u32 %v925, 4294901760
    %1161 = vmatmul.f32.gmra.mxu0 %v1160
    %v1162 = vpop.f32.mrf.mxu0
    %v1163 = vadd.f32 %v1072, %v1162
    %1164 = vdwg.mxu0
    %1165 = vmatpush.msra.mxu0 0.0
    %1166 = vmatpush.msra.mxu0 0.0
    %1167 = vmatpush.msra.mxu0 0.0
    %1168 = vmatpush.msra.mxu0 0.0
    %1169 = vmatpush.msra.mxu0 0.0
    %1170 = vmatpush.msra.mxu0 0.0
    %1171 = vmatpush.msra.mxu0 0.0
    %1172 = vmatpush.msra.mxu0 0.0
    %1173 = vmatpush.msra.mxu0 0.0
    %1174 = vmatpush.msra.mxu0 0.0
    %1175 = vmatpush.msra.mxu0 0.0
    %1176 = vmatpush.msra.mxu0 0.0
    %1177 = vmatpush.msra.mxu0 0.0
    %1178 = vmatpush.msra.mxu0 0.0
    %v1179 = vand.u32 %v48, 4294901760
    %v1180 = vsub.f32 %v48, %v1179
    %1181 = vmatpush.msra.mxu0 %v1180
    %v1182 = vand.u32 %v47, 4294901760
    %v1183 = vsub.f32 %v47, %v1182
    %1184 = vmatpush.msra.mxu0 %v1183
    %v1185 = vand.u32 %v880, 4294901760
    %v1186 = vsub.f32 %v880, %v1185
    %1187 = vmatmul.f32.gmra.mxu0 %v1186
    %v1188 = vpop.f32.mrf.mxu0
    %v1189 = vadd.f32 %v1103, %v1188
    %v1190 = vand.u32 %v883, 4294901760
    %v1191 = vsub.f32 %v883, %v1190
    %1192 = vmatmul.f32.gmra.mxu0 %v1191
    %v1193 = vpop.f32.mrf.mxu0
    %v1194 = vadd.f32 %v1107, %v1193
    %v1195 = vand.u32 %v886, 4294901760
    %v1196 = vsub.f32 %v886, %v1195
    %1197 = vmatmul.f32.gmra.mxu0 %v1196
    %v1198 = vpop.f32.mrf.mxu0
    %v1199 = vadd.f32 %v1111, %v1198
    %v1200 = vand.u32 %v889, 4294901760
    %v1201 = vsub.f32 %v889, %v1200
    %1202 = vmatmul.f32.gmra.mxu0 %v1201
    %v1203 = vpop.f32.mrf.mxu0
    %v1204 = vadd.f32 %v1115, %v1203
    %v1205 = vand.u32 %v892, 4294901760
    %v1206 = vsub.f32 %v892, %v1205
    %1207 = vmatmul.f32.gmra.mxu0 %v1206
    %v1208 = vpop.f32.mrf.mxu0
    %v1209 = vadd.f32 %v1119, %v1208
    %v1210 = vand.u32 %v895, 4294901760
    %v1211 = vsub.f32 %v895, %v1210
    %1212 = vmatmul.f32.gmra.mxu0 %v1211
    %v1213 = vpop.f32.mrf.mxu0
    %v1214 = vadd.f32 %v1123, %v1213
    %v1215 = vand.u32 %v898, 4294901760
    %v1216 = vsub.f32 %v898, %v1215
    %1217 = vmatmul.f32.gmra.mxu0 %v1216
    %v1218 = vpop.f32.mrf.mxu0
    %v1219 = vadd.f32 %v1127, %v1218
    %v1220 = vand.u32 %v901, 4294901760
    %v1221 = vsub.f32 %v901, %v1220
    %1222 = vmatmul.f32.gmra.mxu0 %v1221
    %v1223 = vpop.f32.mrf.mxu0
    %v1224 = vadd.f32 %v1131, %v1223
    %v1225 = vand.u32 %v904, 4294901760
    %v1226 = vsub.f32 %v904, %v1225
    %1227 = vmatmul.f32.gmra.mxu0 %v1226
    %v1228 = vpop.f32.mrf.mxu0
    %v1229 = vadd.f32 %v1135, %v1228
    %v1230 = vand.u32 %v907, 4294901760
    %v1231 = vsub.f32 %v907, %v1230
    %1232 = vmatmul.f32.gmra.mxu0 %v1231
    %v1233 = vpop.f32.mrf.mxu0
    %v1234 = vadd.f32 %v1139, %v1233
    %v1235 = vand.u32 %v910, 4294901760
    %v1236 = vsub.f32 %v910, %v1235
    %1237 = vmatmul.f32.gmra.mxu0 %v1236
    %v1238 = vpop.f32.mrf.mxu0
    %v1239 = vadd.f32 %v1143, %v1238
    %v1240 = vand.u32 %v913, 4294901760
    %v1241 = vsub.f32 %v913, %v1240
    %1242 = vmatmul.f32.gmra.mxu0 %v1241
    %v1243 = vpop.f32.mrf.mxu0
    %v1244 = vadd.f32 %v1147, %v1243
    %v1245 = vand.u32 %v916, 4294901760
    %v1246 = vsub.f32 %v916, %v1245
    %1247 = vmatmul.f32.gmra.mxu0 %v1246
    %v1248 = vpop.f32.mrf.mxu0
    %v1249 = vadd.f32 %v1151, %v1248
    %v1250 = vand.u32 %v919, 4294901760
    %v1251 = vsub.f32 %v919, %v1250
    %1252 = vmatmul.f32.gmra.mxu0 %v1251
    %v1253 = vpop.f32.mrf.mxu0
    %v1254 = vadd.f32 %v1155, %v1253
    %v1255 = vand.u32 %v922, 4294901760
    %v1256 = vsub.f32 %v922, %v1255
    %1257 = vmatmul.f32.gmra.mxu0 %v1256
    %v1258 = vpop.f32.mrf.mxu0
    %v1259 = vadd.f32 %v1159, %v1258
    %v1260 = vand.u32 %v925, 4294901760
    %v1261 = vsub.f32 %v925, %v1260
    %1262 = vmatmul.f32.gmra.mxu0 %v1261
    %v1263 = vpop.f32.mrf.mxu0
    %v1264 = vadd.f32 %v1163, %v1263
    %1265 = vdwg.mxu0
    %1266 = vmatpush.msra.mxu0 0.0
    %1267 = vmatpush.msra.mxu0 0.0
    %1268 = vmatpush.msra.mxu0 0.0
    %1269 = vmatpush.msra.mxu0 0.0
    %1270 = vmatpush.msra.mxu0 0.0
    %1271 = vmatpush.msra.mxu0 0.0
    %1272 = vmatpush.msra.mxu0 0.0
    %1273 = vmatpush.msra.mxu0 0.0
    %1274 = vmatpush.msra.mxu0 0.0
    %1275 = vmatpush.msra.mxu0 0.0
    %1276 = vmatpush.msra.mxu0 0.0
    %1277 = vmatpush.msra.mxu0 0.0
    %1278 = vmatpush.msra.mxu0 0.0
    %1279 = vmatpush.msra.mxu0 0.0
    %v1280 = vand.u32 %v48, 4294901760
    %1281 = vmatpush.msra.mxu0 %v1280
    %v1282 = vand.u32 %v47, 4294901760
    %1283 = vmatpush.msra.mxu0 %v1282
    %v1284 = vand.u32 %v880, 4294901760
    %v1285 = vsub.f32 %v880, %v1284
    %v1286 = vand.u32 %v1285, 4294901760
    %1287 = vmatmul.f32.gmra.mxu0 %v1286
    %v1288 = vpop.f32.mrf.mxu0
    %v1289 = vadd.f32 %v1189, %v1288
    %v1290 = vand.u32 %v883, 4294901760
    %v1291 = vsub.f32 %v883, %v1290
    %v1292 = vand.u32 %v1291, 4294901760
    %1293 = vmatmul.f32.gmra.mxu0 %v1292
    %v1294 = vpop.f32.mrf.mxu0
    %v1295 = vadd.f32 %v1194, %v1294
    %v1296 = vand.u32 %v886, 4294901760
    %v1297 = vsub.f32 %v886, %v1296
    %v1298 = vand.u32 %v1297, 4294901760
    %1299 = vmatmul.f32.gmra.mxu0 %v1298
    %v1300 = vpop.f32.mrf.mxu0
    %v1301 = vadd.f32 %v1199, %v1300
    %v1302 = vand.u32 %v889, 4294901760
    %v1303 = vsub.f32 %v889, %v1302
    %v1304 = vand.u32 %v1303, 4294901760
    %1305 = vmatmul.f32.gmra.mxu0 %v1304
    %v1306 = vpop.f32.mrf.mxu0
    %v1307 = vadd.f32 %v1204, %v1306
    %v1308 = vand.u32 %v892, 4294901760
    %v1309 = vsub.f32 %v892, %v1308
    %v1310 = vand.u32 %v1309, 4294901760
    %1311 = vmatmul.f32.gmra.mxu0 %v1310
    %v1312 = vpop.f32.mrf.mxu0
    %v1313 = vadd.f32 %v1209, %v1312
    %v1314 = vand.u32 %v895, 4294901760
    %v1315 = vsub.f32 %v895, %v1314
    %v1316 = vand.u32 %v1315, 4294901760
    %1317 = vmatmul.f32.gmra.mxu0 %v1316
    %v1318 = vpop.f32.mrf.mxu0
    %v1319 = vadd.f32 %v1214, %v1318
    %v1320 = vand.u32 %v898, 4294901760
    %v1321 = vsub.f32 %v898, %v1320
    %v1322 = vand.u32 %v1321, 4294901760
    %1323 = vmatmul.f32.gmra.mxu0 %v1322
    %v1324 = vpop.f32.mrf.mxu0
    %v1325 = vadd.f32 %v1219, %v1324
    %v1326 = vand.u32 %v901, 4294901760
    %v1327 = vsub.f32 %v901, %v1326
    %v1328 = vand.u32 %v1327, 4294901760
    %1329 = vmatmul.f32.gmra.mxu0 %v1328
    %v1330 = vpop.f32.mrf.mxu0
    %v1331 = vadd.f32 %v1224, %v1330
    %v1332 = vand.u32 %v904, 4294901760
    %v1333 = vsub.f32 %v904, %v1332
    %v1334 = vand.u32 %v1333, 4294901760
    %1335 = vmatmul.f32.gmra.mxu0 %v1334
    %v1336 = vpop.f32.mrf.mxu0
    %v1337 = vadd.f32 %v1229, %v1336
    %v1338 = vand.u32 %v907, 4294901760
    %v1339 = vsub.f32 %v907, %v1338
    %v1340 = vand.u32 %v1339, 4294901760
    %1341 = vmatmul.f32.gmra.mxu0 %v1340
    %v1342 = vpop.f32.mrf.mxu0
    %v1343 = vadd.f32 %v1234, %v1342
    %v1344 = vand.u32 %v910, 4294901760
    %v1345 = vsub.f32 %v910, %v1344
    %v1346 = vand.u32 %v1345, 4294901760
    %1347 = vmatmul.f32.gmra.mxu0 %v1346
    %v1348 = vpop.f32.mrf.mxu0
    %v1349 = vadd.f32 %v1239, %v1348
    %v1350 = vand.u32 %v913, 4294901760
    %v1351 = vsub.f32 %v913, %v1350
    %v1352 = vand.u32 %v1351, 4294901760
    %1353 = vmatmul.f32.gmra.mxu0 %v1352
    %v1354 = vpop.f32.mrf.mxu0
    %v1355 = vadd.f32 %v1244, %v1354
    %v1356 = vand.u32 %v916, 4294901760
    %v1357 = vsub.f32 %v916, %v1356
    %v1358 = vand.u32 %v1357, 4294901760
    %1359 = vmatmul.f32.gmra.mxu0 %v1358
    %v1360 = vpop.f32.mrf.mxu0
    %v1361 = vadd.f32 %v1249, %v1360
    %v1362 = vand.u32 %v919, 4294901760
    %v1363 = vsub.f32 %v919, %v1362
    %v1364 = vand.u32 %v1363, 4294901760
    %1365 = vmatmul.f32.gmra.mxu0 %v1364
    %v1366 = vpop.f32.mrf.mxu0
    %v1367 = vadd.f32 %v1254, %v1366
    %v1368 = vand.u32 %v922, 4294901760
    %v1369 = vsub.f32 %v922, %v1368
    %v1370 = vand.u32 %v1369, 4294901760
    %1371 = vmatmul.f32.gmra.mxu0 %v1370
    %v1372 = vpop.f32.mrf.mxu0
    %v1373 = vadd.f32 %v1259, %v1372
    %v1374 = vand.u32 %v925, 4294901760
    %v1375 = vsub.f32 %v925, %v1374
    %v1376 = vand.u32 %v1375, 4294901760
    %1377 = vmatmul.f32.gmra.mxu0 %v1376
    %v1378 = vpop.f32.mrf.mxu0
    %v1379 = vadd.f32 %v1264, %v1378
    %1380 = vdwg.mxu0
    %1381 = vmatpush.msra.mxu0 0.0
    %1382 = vmatpush.msra.mxu0 0.0
    %1383 = vmatpush.msra.mxu0 0.0
    %1384 = vmatpush.msra.mxu0 0.0
    %1385 = vmatpush.msra.mxu0 0.0
    %1386 = vmatpush.msra.mxu0 0.0
    %1387 = vmatpush.msra.mxu0 0.0
    %1388 = vmatpush.msra.mxu0 0.0
    %1389 = vmatpush.msra.mxu0 0.0
    %1390 = vmatpush.msra.mxu0 0.0
    %1391 = vmatpush.msra.mxu0 0.0
    %1392 = vmatpush.msra.mxu0 0.0
    %1393 = vmatpush.msra.mxu0 0.0
    %1394 = vmatpush.msra.mxu0 0.0
    %v1395 = vand.u32 %v48, 4294901760
    %v1396 = vsub.f32 %v48, %v1395
    %v1397 = vand.u32 %v1396, 4294901760
    %1398 = vmatpush.msra.mxu0 %v1397
    %v1399 = vand.u32 %v47, 4294901760
    %v1400 = vsub.f32 %v47, %v1399
    %v1401 = vand.u32 %v1400, 4294901760
    %1402 = vmatpush.msra.mxu0 %v1401
    %v1403 = vand.u32 %v880, 4294901760
    %1404 = vmatmul.f32.gmra.mxu0 %v1403
    %v1405 = vpop.f32.mrf.mxu0
    %v1406 = vadd.f32 %v1289, %v1405
    %v1407 = vand.u32 %v883, 4294901760
    %1408 = vmatmul.f32.gmra.mxu0 %v1407
    %v1409 = vpop.f32.mrf.mxu0
    %v1410 = vadd.f32 %v1295, %v1409
    %v1411 = vand.u32 %v886, 4294901760
    %1412 = vmatmul.f32.gmra.mxu0 %v1411
    %v1413 = vpop.f32.mrf.mxu0
    %v1414 = vadd.f32 %v1301, %v1413
    %v1415 = vand.u32 %v889, 4294901760
    %1416 = vmatmul.f32.gmra.mxu0 %v1415
    %v1417 = vpop.f32.mrf.mxu0
    %v1418 = vadd.f32 %v1307, %v1417
    %v1419 = vand.u32 %v892, 4294901760
    %1420 = vmatmul.f32.gmra.mxu0 %v1419
    %v1421 = vpop.f32.mrf.mxu0
    %v1422 = vadd.f32 %v1313, %v1421
    %v1423 = vand.u32 %v895, 4294901760
    %1424 = vmatmul.f32.gmra.mxu0 %v1423
    %v1425 = vpop.f32.mrf.mxu0
    %v1426 = vadd.f32 %v1319, %v1425
    %v1427 = vand.u32 %v898, 4294901760
    %1428 = vmatmul.f32.gmra.mxu0 %v1427
    %v1429 = vpop.f32.mrf.mxu0
    %v1430 = vadd.f32 %v1325, %v1429
    %v1431 = vand.u32 %v901, 4294901760
    %1432 = vmatmul.f32.gmra.mxu0 %v1431
    %v1433 = vpop.f32.mrf.mxu0
    %v1434 = vadd.f32 %v1331, %v1433
    %v1435 = vand.u32 %v904, 4294901760
    %1436 = vmatmul.f32.gmra.mxu0 %v1435
    %v1437 = vpop.f32.mrf.mxu0
    %v1438 = vadd.f32 %v1337, %v1437
    %v1439 = vand.u32 %v907, 4294901760
    %1440 = vmatmul.f32.gmra.mxu0 %v1439
    %v1441 = vpop.f32.mrf.mxu0
    %v1442 = vadd.f32 %v1343, %v1441
    %v1443 = vand.u32 %v910, 4294901760
    %1444 = vmatmul.f32.gmra.mxu0 %v1443
    %v1445 = vpop.f32.mrf.mxu0
    %v1446 = vadd.f32 %v1349, %v1445
    %v1447 = vand.u32 %v913, 4294901760
    %1448 = vmatmul.f32.gmra.mxu0 %v1447
    %v1449 = vpop.f32.mrf.mxu0
    %v1450 = vadd.f32 %v1355, %v1449
    %v1451 = vand.u32 %v916, 4294901760
    %1452 = vmatmul.f32.gmra.mxu0 %v1451
    %v1453 = vpop.f32.mrf.mxu0
    %v1454 = vadd.f32 %v1361, %v1453
    %v1455 = vand.u32 %v919, 4294901760
    %1456 = vmatmul.f32.gmra.mxu0 %v1455
    %v1457 = vpop.f32.mrf.mxu0
    %v1458 = vadd.f32 %v1367, %v1457
    %v1459 = vand.u32 %v922, 4294901760
    %1460 = vmatmul.f32.gmra.mxu0 %v1459
    %v1461 = vpop.f32.mrf.mxu0
    %v1462 = vadd.f32 %v1373, %v1461
    %v1463 = vand.u32 %v925, 4294901760
    %1464 = vmatmul.f32.gmra.mxu0 %v1463
    %v1465 = vpop.f32.mrf.mxu0
    %v1466 = vadd.f32 %v1379, %v1465
    %1467 = vdwg.mxu0
    %1468 = vmatpush.msra.mxu0 0.0
    %1469 = vmatpush.msra.mxu0 0.0
    %1470 = vmatpush.msra.mxu0 0.0
    %1471 = vmatpush.msra.mxu0 0.0
    %1472 = vmatpush.msra.mxu0 0.0
    %1473 = vmatpush.msra.mxu0 0.0
    %1474 = vmatpush.msra.mxu0 0.0
    %1475 = vmatpush.msra.mxu0 0.0
    %1476 = vmatpush.msra.mxu0 0.0
    %1477 = vmatpush.msra.mxu0 0.0
    %1478 = vmatpush.msra.mxu0 0.0
    %1479 = vmatpush.msra.mxu0 0.0
    %1480 = vmatpush.msra.mxu0 0.0
    %1481 = vmatpush.msra.mxu0 0.0
    %v1482 = vand.u32 %v48, 4294901760
    %1483 = vmatpush.msra.mxu0 %v1482
    %v1484 = vand.u32 %v47, 4294901760
    %1485 = vmatpush.msra.mxu0 %v1484
    %v1486 = vand.u32 %v880, 4294901760
    %1487 = vmatmul.f32.gmra.mxu0 %v1486
    %v1488 = vpop.f32.mrf.mxu0
    %v1489 = vadd.f32 %v1406, %v1488
    %v1490 = vand.u32 %v883, 4294901760
    %1491 = vmatmul.f32.gmra.mxu0 %v1490
    %v1492 = vpop.f32.mrf.mxu0
    %v1493 = vadd.f32 %v1410, %v1492
    %v1494 = vand.u32 %v886, 4294901760
    %1495 = vmatmul.f32.gmra.mxu0 %v1494
    %v1496 = vpop.f32.mrf.mxu0
    %v1497 = vadd.f32 %v1414, %v1496
    %v1498 = vand.u32 %v889, 4294901760
    %1499 = vmatmul.f32.gmra.mxu0 %v1498
    %v1500 = vpop.f32.mrf.mxu0
    %v1501 = vadd.f32 %v1418, %v1500
    %v1502 = vand.u32 %v892, 4294901760
    %1503 = vmatmul.f32.gmra.mxu0 %v1502
    %v1504 = vpop.f32.mrf.mxu0
    %v1505 = vadd.f32 %v1422, %v1504
    %v1506 = vand.u32 %v895, 4294901760
    %1507 = vmatmul.f32.gmra.mxu0 %v1506
    %v1508 = vpop.f32.mrf.mxu0
    %v1509 = vadd.f32 %v1426, %v1508
    %v1510 = vand.u32 %v898, 4294901760
    %1511 = vmatmul.f32.gmra.mxu0 %v1510
    %v1512 = vpop.f32.mrf.mxu0
    %v1513 = vadd.f32 %v1430, %v1512
    %v1514 = vand.u32 %v901, 4294901760
    %1515 = vmatmul.f32.gmra.mxu0 %v1514
    %v1516 = vpop.f32.mrf.mxu0
    %v1517 = vadd.f32 %v1434, %v1516
    %v1518 = vand.u32 %v904, 4294901760
    %1519 = vmatmul.f32.gmra.mxu0 %v1518
    %v1520 = vpop.f32.mrf.mxu0
    %v1521 = vadd.f32 %v1438, %v1520
    %v1522 = vand.u32 %v907, 4294901760
    %1523 = vmatmul.f32.gmra.mxu0 %v1522
    %v1524 = vpop.f32.mrf.mxu0
    %v1525 = vadd.f32 %v1442, %v1524
    %v1526 = vand.u32 %v910, 4294901760
    %1527 = vmatmul.f32.gmra.mxu0 %v1526
    %v1528 = vpop.f32.mrf.mxu0
    %v1529 = vadd.f32 %v1446, %v1528
    %v1530 = vand.u32 %v913, 4294901760
    %1531 = vmatmul.f32.gmra.mxu0 %v1530
    %v1532 = vpop.f32.mrf.mxu0
    %v1533 = vadd.f32 %v1450, %v1532
    %v1534 = vand.u32 %v916, 4294901760
    %1535 = vmatmul.f32.gmra.mxu0 %v1534
    %v1536 = vpop.f32.mrf.mxu0
    %v1537 = vadd.f32 %v1454, %v1536
    %v1538 = vand.u32 %v919, 4294901760
    %1539 = vmatmul.f32.gmra.mxu0 %v1538
    %v1540 = vpop.f32.mrf.mxu0
    %v1541 = vadd.f32 %v1458, %v1540
    %v1542 = vand.u32 %v922, 4294901760
    %1543 = vmatmul.f32.gmra.mxu0 %v1542
    %v1544 = vpop.f32.mrf.mxu0
    %v1545 = vadd.f32 %v1462, %v1544
    %v1546 = vand.u32 %v925, 4294901760
    %1547 = vmatmul.f32.gmra.mxu0 %v1546
    %v1548 = vpop.f32.mrf.mxu0
    %v1549 = vadd.f32 %v1466, %v1548
    %1550 = vdwg.mxu0
    %v1551 = vmax.f32 %v1489, 0.0
    %v1552 = vmax.f32 %v1493, 0.0
    %v1553 = vmax.f32 %v1497, 0.0
    %v1554 = vmax.f32 %v1501, 0.0
    %v1555 = vmax.f32 %v1505, 0.0
    %v1556 = vmax.f32 %v1509, 0.0
    %v1557 = vmax.f32 %v1513, 0.0
    %v1558 = vmax.f32 %v1517, 0.0
    %v1559 = vmax.f32 %v1521, 0.0
    %v1560 = vmax.f32 %v1525, 0.0
    %v1561 = vmax.f32 %v1529, 0.0
    %v1562 = vmax.f32 %v1533, 0.0
    %v1563 = vmax.f32 %v1537, 0.0
    %v1564 = vmax.f32 %v1541, 0.0
    %v1565 = vmax.f32 %v1545, 0.0
    %v1566 = vmax.f32 %v1549, 0.0
    %1567 = vxpose.xlu0.b32.start [1/16] %v49, 128
    %1568 = vxpose.xlu0.b32.cont [2/16] %v50, 128
    %1569 = vxpose.xlu0.b32.cont [3/16] 0.0, 128
    %1570 = vxpose.xlu0.b32.cont [4/16] 0.0, 128
    %1571 = vxpose.xlu0.b32.cont [5/16] 0.0, 128
    %1572 = vxpose.xlu0.b32.cont [6/16] 0.0, 128
    %1573 = vxpose.xlu0.b32.cont [7/16] 0.0, 128
    %1574 = vxpose.xlu0.b32.cont [8/16] 0.0, 128
    %1575 = vxpose.xlu0.b32.cont [9/16] 0.0, 128
    %1576 = vxpose.xlu0.b32.cont [10/16] 0.0, 128
    %1577 = vxpose.xlu0.b32.cont [11/16] 0.0, 128
    %1578 = vxpose.xlu0.b32.cont [12/16] 0.0, 128
    %1579 = vxpose.xlu0.b32.cont [13/16] 0.0, 128
    %1580 = vxpose.xlu0.b32.cont [14/16] 0.0, 128
    %1581 = vxpose.xlu0.b32.cont [15/16] 0.0, 128
    %1582 = vxpose.xlu0.b32.end [16/16] 0.0, 128
    %v1583 = vpop.trf.xlu0
    %v1584 = vpop.trf.xlu0
    %v1585 = vpop.trf.xlu0
    %v1586 = vpop.trf.xlu0
    %v1587 = vpop.trf.xlu0
    %v1588 = vpop.trf.xlu0
    %v1589 = vpop.trf.xlu0
    %v1590 = vpop.trf.xlu0
    %v1591 = vpop.trf.xlu0
    %v1592 = vpop.trf.xlu0
    %v1593 = vpop.trf.xlu0
    %v1594 = vpop.trf.xlu0
    %v1595 = vpop.trf.xlu0
    %v1596 = vpop.trf.xlu0
    %v1597 = vpop.trf.xlu0
    %v1598 = vpop.trf.xlu0
    %v1600 = vsel %vm878, %v1583, 0
    %v1603 = vsel %vm878, %v1584, 0
    %v1606 = vsel %vm878, %v1551, 0
    %v1609 = vsel %vm878, %v1552, 0
    %v1612 = vsel %vm878, %v1553, 0
    %v1615 = vsel %vm878, %v1554, 0
    %v1618 = vsel %vm878, %v1555, 0
    %v1621 = vsel %vm878, %v1556, 0
    %v1624 = vsel %vm878, %v1557, 0
    %v1627 = vsel %vm878, %v1558, 0
    %v1630 = vsel %vm878, %v1559, 0
    %v1633 = vsel %vm878, %v1560, 0
    %v1636 = vsel %vm878, %v1561, 0
    %v1639 = vsel %vm878, %v1562, 0
    %v1642 = vsel %vm878, %v1563, 0
    %v1645 = vsel %vm878, %v1564, 0
    %v1648 = vsel %vm878, %v1565, 0
    %v1651 = vsel %vm878, %v1566, 0
    %v1653 = vand.u32 %v1651, 4294901760
    %1654 = vmatpush.xpose.msra.mxu0 %v1653
    %v1655 = vand.u32 %v1648, 4294901760
    %1656 = vmatpush.xpose.msra.mxu0 %v1655
    %v1657 = vand.u32 %v1645, 4294901760
    %1658 = vmatpush.xpose.msra.mxu0 %v1657
    %v1659 = vand.u32 %v1642, 4294901760
    %1660 = vmatpush.xpose.msra.mxu0 %v1659
    %v1661 = vand.u32 %v1639, 4294901760
    %1662 = vmatpush.xpose.msra.mxu0 %v1661
    %v1663 = vand.u32 %v1636, 4294901760
    %1664 = vmatpush.xpose.msra.mxu0 %v1663
    %v1665 = vand.u32 %v1633, 4294901760
    %1666 = vmatpush.xpose.msra.mxu0 %v1665
    %v1667 = vand.u32 %v1630, 4294901760
    %1668 = vmatpush.xpose.msra.mxu0 %v1667
    %v1669 = vand.u32 %v1627, 4294901760
    %1670 = vmatpush.xpose.msra.mxu0 %v1669
    %v1671 = vand.u32 %v1624, 4294901760
    %1672 = vmatpush.xpose.msra.mxu0 %v1671
    %v1673 = vand.u32 %v1621, 4294901760
    %1674 = vmatpush.xpose.msra.mxu0 %v1673
    %v1675 = vand.u32 %v1618, 4294901760
    %1676 = vmatpush.xpose.msra.mxu0 %v1675
    %v1677 = vand.u32 %v1615, 4294901760
    %1678 = vmatpush.xpose.msra.mxu0 %v1677
    %v1679 = vand.u32 %v1612, 4294901760
    %1680 = vmatpush.xpose.msra.mxu0 %v1679
    %v1681 = vand.u32 %v1609, 4294901760
    %1682 = vmatpush.xpose.msra.mxu0 %v1681
    %v1683 = vand.u32 %v1606, 4294901760
    %1684 = vmatpush.xpose.msra.mxu0 %v1683
    %v1685 = vand.u32 %v1600, 4294901760
    %v1686 = vsub.f32 %v1600, %v1685
    %v1687 = vand.u32 %v1686, 4294901760
    %v1688 = vsub.f32 %v1686, %v1687
    %v1689 = vand.u32 %v1688, 4294901760
    %1690 = vmatmul.f32.gmra.mxu0 %v1689
    %v1691 = vpop.f32.mrf.mxu0
    %v1692 = vadd.f32 0.0, %v1691
    %v1693 = vand.u32 %v1603, 4294901760
    %v1694 = vsub.f32 %v1603, %v1693
    %v1695 = vand.u32 %v1694, 4294901760
    %v1696 = vsub.f32 %v1694, %v1695
    %v1697 = vand.u32 %v1696, 4294901760
    %1698 = vmatmul.f32.gmra.mxu0 %v1697
    %v1699 = vpop.f32.mrf.mxu0
    %1700 = vdwg.mxu0
    %v1701 = vand.u32 %v1651, 4294901760
    %v1702 = vsub.f32 %v1651, %v1701
    %v1703 = vand.u32 %v1702, 4294901760
    %v1704 = vsub.f32 %v1702, %v1703
    %v1705 = vand.u32 %v1704, 4294901760
    %1706 = vmatpush.xpose.msra.mxu0 %v1705
    %v1707 = vand.u32 %v1648, 4294901760
    %v1708 = vsub.f32 %v1648, %v1707
    %v1709 = vand.u32 %v1708, 4294901760
    %v1710 = vsub.f32 %v1708, %v1709
    %v1711 = vand.u32 %v1710, 4294901760
    %1712 = vmatpush.xpose.msra.mxu0 %v1711
    %v1713 = vand.u32 %v1645, 4294901760
    %v1714 = vsub.f32 %v1645, %v1713
    %v1715 = vand.u32 %v1714, 4294901760
    %v1716 = vsub.f32 %v1714, %v1715
    %v1717 = vand.u32 %v1716, 4294901760
    %1718 = vmatpush.xpose.msra.mxu0 %v1717
    %v1719 = vand.u32 %v1642, 4294901760
    %v1720 = vsub.f32 %v1642, %v1719
    %v1721 = vand.u32 %v1720, 4294901760
    %v1722 = vsub.f32 %v1720, %v1721
    %v1723 = vand.u32 %v1722, 4294901760
    %1724 = vmatpush.xpose.msra.mxu0 %v1723
    %v1725 = vand.u32 %v1639, 4294901760
    %v1726 = vsub.f32 %v1639, %v1725
    %v1727 = vand.u32 %v1726, 4294901760
    %v1728 = vsub.f32 %v1726, %v1727
    %v1729 = vand.u32 %v1728, 4294901760
    %1730 = vmatpush.xpose.msra.mxu0 %v1729
    %v1731 = vand.u32 %v1636, 4294901760
    %v1732 = vsub.f32 %v1636, %v1731
    %v1733 = vand.u32 %v1732, 4294901760
    %v1734 = vsub.f32 %v1732, %v1733
    %v1735 = vand.u32 %v1734, 4294901760
    %1736 = vmatpush.xpose.msra.mxu0 %v1735
    %v1737 = vand.u32 %v1633, 4294901760
    %v1738 = vsub.f32 %v1633, %v1737
    %v1739 = vand.u32 %v1738, 4294901760
    %v1740 = vsub.f32 %v1738, %v1739
    %v1741 = vand.u32 %v1740, 4294901760
    %1742 = vmatpush.xpose.msra.mxu0 %v1741
    %v1743 = vand.u32 %v1630, 4294901760
    %v1744 = vsub.f32 %v1630, %v1743
    %v1745 = vand.u32 %v1744, 4294901760
    %v1746 = vsub.f32 %v1744, %v1745
    %v1747 = vand.u32 %v1746, 4294901760
    %1748 = vmatpush.xpose.msra.mxu0 %v1747
    %v1749 = vand.u32 %v1627, 4294901760
    %v1750 = vsub.f32 %v1627, %v1749
    %v1751 = vand.u32 %v1750, 4294901760
    %v1752 = vsub.f32 %v1750, %v1751
    %v1753 = vand.u32 %v1752, 4294901760
    %1754 = vmatpush.xpose.msra.mxu0 %v1753
    %v1755 = vand.u32 %v1624, 4294901760
    %v1756 = vsub.f32 %v1624, %v1755
    %v1757 = vand.u32 %v1756, 4294901760
    %v1758 = vsub.f32 %v1756, %v1757
    %v1759 = vand.u32 %v1758, 4294901760
    %1760 = vmatpush.xpose.msra.mxu0 %v1759
    %v1761 = vand.u32 %v1621, 4294901760
    %v1762 = vsub.f32 %v1621, %v1761
    %v1763 = vand.u32 %v1762, 4294901760
    %v1764 = vsub.f32 %v1762, %v1763
    %v1765 = vand.u32 %v1764, 4294901760
    %1766 = vmatpush.xpose.msra.mxu0 %v1765
    %v1767 = vand.u32 %v1618, 4294901760
    %v1768 = vsub.f32 %v1618, %v1767
    %v1769 = vand.u32 %v1768, 4294901760
    %v1770 = vsub.f32 %v1768, %v1769
    %v1771 = vand.u32 %v1770, 4294901760
    %1772 = vmatpush.xpose.msra.mxu0 %v1771
    %v1773 = vand.u32 %v1615, 4294901760
    %v1774 = vsub.f32 %v1615, %v1773
    %v1775 = vand.u32 %v1774, 4294901760
    %v1776 = vsub.f32 %v1774, %v1775
    %v1777 = vand.u32 %v1776, 4294901760
    %1778 = vmatpush.xpose.msra.mxu0 %v1777
    %v1779 = vand.u32 %v1612, 4294901760
    %v1780 = vsub.f32 %v1612, %v1779
    %v1781 = vand.u32 %v1780, 4294901760
    %v1782 = vsub.f32 %v1780, %v1781
    %v1783 = vand.u32 %v1782, 4294901760
    %1784 = vmatpush.xpose.msra.mxu0 %v1783
    %v1785 = vand.u32 %v1609, 4294901760
    %v1786 = vsub.f32 %v1609, %v1785
    %v1787 = vand.u32 %v1786, 4294901760
    %v1788 = vsub.f32 %v1786, %v1787
    %v1789 = vand.u32 %v1788, 4294901760
    %1790 = vmatpush.xpose.msra.mxu0 %v1789
    %v1791 = vand.u32 %v1606, 4294901760
    %v1792 = vsub.f32 %v1606, %v1791
    %v1793 = vand.u32 %v1792, 4294901760
    %v1794 = vsub.f32 %v1792, %v1793
    %v1795 = vand.u32 %v1794, 4294901760
    %1796 = vmatpush.xpose.msra.mxu0 %v1795
    %v1797 = vand.u32 %v1600, 4294901760
    %1798 = vmatmul.f32.gmra.mxu0 %v1797
    %v1799 = vpop.f32.mrf.mxu0
    %v1800 = vadd.f32 %v1692, %v1799
    %v1801 = vand.u32 %v1603, 4294901760
    %1802 = vmatmul.f32.gmra.mxu0 %v1801
    %v1803 = vpop.f32.mrf.mxu0
    %1804 = vdwg.mxu0
    %v1805 = vand.u32 %v1651, 4294901760
    %v1806 = vsub.f32 %v1651, %v1805
    %1807 = vmatpush.xpose.msra.mxu0 %v1806
    %v1808 = vand.u32 %v1648, 4294901760
    %v1809 = vsub.f32 %v1648, %v1808
    %1810 = vmatpush.xpose.msra.mxu0 %v1809
    %v1811 = vand.u32 %v1645, 4294901760
    %v1812 = vsub.f32 %v1645, %v1811
    %1813 = vmatpush.xpose.msra.mxu0 %v1812
    %v1814 = vand.u32 %v1642, 4294901760
    %v1815 = vsub.f32 %v1642, %v1814
    %1816 = vmatpush.xpose.msra.mxu0 %v1815
    %v1817 = vand.u32 %v1639, 4294901760
    %v1818 = vsub.f32 %v1639, %v1817
    %1819 = vmatpush.xpose.msra.mxu0 %v1818
    %v1820 = vand.u32 %v1636, 4294901760
    %v1821 = vsub.f32 %v1636, %v1820
    %1822 = vmatpush.xpose.msra.mxu0 %v1821
    %v1823 = vand.u32 %v1633, 4294901760
    %v1824 = vsub.f32 %v1633, %v1823
    %1825 = vmatpush.xpose.msra.mxu0 %v1824
    %v1826 = vand.u32 %v1630, 4294901760
    %v1827 = vsub.f32 %v1630, %v1826
    %1828 = vmatpush.xpose.msra.mxu0 %v1827
    %v1829 = vand.u32 %v1627, 4294901760
    %v1830 = vsub.f32 %v1627, %v1829
    %1831 = vmatpush.xpose.msra.mxu0 %v1830
    %v1832 = vand.u32 %v1624, 4294901760
    %v1833 = vsub.f32 %v1624, %v1832
    %1834 = vmatpush.xpose.msra.mxu0 %v1833
    %v1835 = vand.u32 %v1621, 4294901760
    %v1836 = vsub.f32 %v1621, %v1835
    %1837 = vmatpush.xpose.msra.mxu0 %v1836
    %v1838 = vand.u32 %v1618, 4294901760
    %v1839 = vsub.f32 %v1618, %v1838
    %1840 = vmatpush.xpose.msra.mxu0 %v1839
    %v1841 = vand.u32 %v1615, 4294901760
    %v1842 = vsub.f32 %v1615, %v1841
    %1843 = vmatpush.xpose.msra.mxu0 %v1842
    %v1844 = vand.u32 %v1612, 4294901760
    %v1845 = vsub.f32 %v1612, %v1844
    %1846 = vmatpush.xpose.msra.mxu0 %v1845
    %v1847 = vand.u32 %v1609, 4294901760
    %v1848 = vsub.f32 %v1609, %v1847
    %1849 = vmatpush.xpose.msra.mxu0 %v1848
    %v1850 = vand.u32 %v1606, 4294901760
    %v1851 = vsub.f32 %v1606, %v1850
    %1852 = vmatpush.xpose.msra.mxu0 %v1851
    %v1853 = vand.u32 %v1600, 4294901760
    %v1854 = vsub.f32 %v1600, %v1853
    %1855 = vmatmul.f32.gmra.mxu0 %v1854
    %v1856 = vpop.f32.mrf.mxu0
    %v1857 = vadd.f32 %v1800, %v1856
    %v1858 = vand.u32 %v1603, 4294901760
    %v1859 = vsub.f32 %v1603, %v1858
    %1860 = vmatmul.f32.gmra.mxu0 %v1859
    %v1861 = vpop.f32.mrf.mxu0
    %1862 = vdwg.mxu0
    %v1863 = vand.u32 %v1651, 4294901760
    %1864 = vmatpush.xpose.msra.mxu0 %v1863
    %v1865 = vand.u32 %v1648, 4294901760
    %1866 = vmatpush.xpose.msra.mxu0 %v1865
    %v1867 = vand.u32 %v1645, 4294901760
    %1868 = vmatpush.xpose.msra.mxu0 %v1867
    %v1869 = vand.u32 %v1642, 4294901760
    %1870 = vmatpush.xpose.msra.mxu0 %v1869
    %v1871 = vand.u32 %v1639, 4294901760
    %1872 = vmatpush.xpose.msra.mxu0 %v1871
    %v1873 = vand.u32 %v1636, 4294901760
    %1874 = vmatpush.xpose.msra.mxu0 %v1873
    %v1875 = vand.u32 %v1633, 4294901760
    %1876 = vmatpush.xpose.msra.mxu0 %v1875
    %v1877 = vand.u32 %v1630, 4294901760
    %1878 = vmatpush.xpose.msra.mxu0 %v1877
    %v1879 = vand.u32 %v1627, 4294901760
    %1880 = vmatpush.xpose.msra.mxu0 %v1879
    %v1881 = vand.u32 %v1624, 4294901760
    %1882 = vmatpush.xpose.msra.mxu0 %v1881
    %v1883 = vand.u32 %v1621, 4294901760
    %1884 = vmatpush.xpose.msra.mxu0 %v1883
    %v1885 = vand.u32 %v1618, 4294901760
    %1886 = vmatpush.xpose.msra.mxu0 %v1885
    %v1887 = vand.u32 %v1615, 4294901760
    %1888 = vmatpush.xpose.msra.mxu0 %v1887
    %v1889 = vand.u32 %v1612, 4294901760
    %1890 = vmatpush.xpose.msra.mxu0 %v1889
    %v1891 = vand.u32 %v1609, 4294901760
    %1892 = vmatpush.xpose.msra.mxu0 %v1891
    %v1893 = vand.u32 %v1606, 4294901760
    %1894 = vmatpush.xpose.msra.mxu0 %v1893
    %v1895 = vand.u32 %v1600, 4294901760
    %v1896 = vsub.f32 %v1600, %v1895
    %v1897 = vand.u32 %v1896, 4294901760
    %1898 = vmatmul.f32.gmra.mxu0 %v1897
    %v1899 = vpop.f32.mrf.mxu0
    %v1900 = vadd.f32 %v1857, %v1899
    %v1901 = vand.u32 %v1603, 4294901760
    %v1902 = vsub.f32 %v1603, %v1901
    %v1903 = vand.u32 %v1902, 4294901760
    %1904 = vmatmul.f32.gmra.mxu0 %v1903
    %v1905 = vpop.f32.mrf.mxu0
    %1906 = vdwg.mxu0
    %v1907 = vand.u32 %v1651, 4294901760
    %v1908 = vsub.f32 %v1651, %v1907
    %v1909 = vand.u32 %v1908, 4294901760
    %1910 = vmatpush.xpose.msra.mxu0 %v1909
    %v1911 = vand.u32 %v1648, 4294901760
    %v1912 = vsub.f32 %v1648, %v1911
    %v1913 = vand.u32 %v1912, 4294901760
    %1914 = vmatpush.xpose.msra.mxu0 %v1913
    %v1915 = vand.u32 %v1645, 4294901760
    %v1916 = vsub.f32 %v1645, %v1915
    %v1917 = vand.u32 %v1916, 4294901760
    %1918 = vmatpush.xpose.msra.mxu0 %v1917
    %v1919 = vand.u32 %v1642, 4294901760
    %v1920 = vsub.f32 %v1642, %v1919
    %v1921 = vand.u32 %v1920, 4294901760
    %1922 = vmatpush.xpose.msra.mxu0 %v1921
    %v1923 = vand.u32 %v1639, 4294901760
    %v1924 = vsub.f32 %v1639, %v1923
    %v1925 = vand.u32 %v1924, 4294901760
    %1926 = vmatpush.xpose.msra.mxu0 %v1925
    %v1927 = vand.u32 %v1636, 4294901760
    %v1928 = vsub.f32 %v1636, %v1927
    %v1929 = vand.u32 %v1928, 4294901760
    %1930 = vmatpush.xpose.msra.mxu0 %v1929
    %v1931 = vand.u32 %v1633, 4294901760
    %v1932 = vsub.f32 %v1633, %v1931
    %v1933 = vand.u32 %v1932, 4294901760
    %1934 = vmatpush.xpose.msra.mxu0 %v1933
    %v1935 = vand.u32 %v1630, 4294901760
    %v1936 = vsub.f32 %v1630, %v1935
    %v1937 = vand.u32 %v1936, 4294901760
    %1938 = vmatpush.xpose.msra.mxu0 %v1937
    %v1939 = vand.u32 %v1627, 4294901760
    %v1940 = vsub.f32 %v1627, %v1939
    %v1941 = vand.u32 %v1940, 4294901760
    %1942 = vmatpush.xpose.msra.mxu0 %v1941
    %v1943 = vand.u32 %v1624, 4294901760
    %v1944 = vsub.f32 %v1624, %v1943
    %v1945 = vand.u32 %v1944, 4294901760
    %1946 = vmatpush.xpose.msra.mxu0 %v1945
    %v1947 = vand.u32 %v1621, 4294901760
    %v1948 = vsub.f32 %v1621, %v1947
    %v1949 = vand.u32 %v1948, 4294901760
    %1950 = vmatpush.xpose.msra.mxu0 %v1949
    %v1951 = vand.u32 %v1618, 4294901760
    %v1952 = vsub.f32 %v1618, %v1951
    %v1953 = vand.u32 %v1952, 4294901760
    %1954 = vmatpush.xpose.msra.mxu0 %v1953
    %v1955 = vand.u32 %v1615, 4294901760
    %v1956 = vsub.f32 %v1615, %v1955
    %v1957 = vand.u32 %v1956, 4294901760
    %1958 = vmatpush.xpose.msra.mxu0 %v1957
    %v1959 = vand.u32 %v1612, 4294901760
    %v1960 = vsub.f32 %v1612, %v1959
    %v1961 = vand.u32 %v1960, 4294901760
    %1962 = vmatpush.xpose.msra.mxu0 %v1961
    %v1963 = vand.u32 %v1609, 4294901760
    %v1964 = vsub.f32 %v1609, %v1963
    %v1965 = vand.u32 %v1964, 4294901760
    %1966 = vmatpush.xpose.msra.mxu0 %v1965
    %v1967 = vand.u32 %v1606, 4294901760
    %v1968 = vsub.f32 %v1606, %v1967
    %v1969 = vand.u32 %v1968, 4294901760
    %1970 = vmatpush.xpose.msra.mxu0 %v1969
    %v1971 = vand.u32 %v1600, 4294901760
    %1972 = vmatmul.f32.gmra.mxu0 %v1971
    %v1973 = vpop.f32.mrf.mxu0
    %v1974 = vadd.f32 %v1900, %v1973
    %v1975 = vand.u32 %v1603, 4294901760
    %1976 = vmatmul.f32.gmra.mxu0 %v1975
    %v1977 = vpop.f32.mrf.mxu0
    %1978 = vdwg.mxu0
    %v1979 = vand.u32 %v1651, 4294901760
    %1980 = vmatpush.xpose.msra.mxu0 %v1979
    %v1981 = vand.u32 %v1648, 4294901760
    %1982 = vmatpush.xpose.msra.mxu0 %v1981
    %v1983 = vand.u32 %v1645, 4294901760
    %1984 = vmatpush.xpose.msra.mxu0 %v1983
    %v1985 = vand.u32 %v1642, 4294901760
    %1986 = vmatpush.xpose.msra.mxu0 %v1985
    %v1987 = vand.u32 %v1639, 4294901760
    %1988 = vmatpush.xpose.msra.mxu0 %v1987
    %v1989 = vand.u32 %v1636, 4294901760
    %1990 = vmatpush.xpose.msra.mxu0 %v1989
    %v1991 = vand.u32 %v1633, 4294901760
    %1992 = vmatpush.xpose.msra.mxu0 %v1991
    %v1993 = vand.u32 %v1630, 4294901760
    %1994 = vmatpush.xpose.msra.mxu0 %v1993
    %v1995 = vand.u32 %v1627, 4294901760
    %1996 = vmatpush.xpose.msra.mxu0 %v1995
    %v1997 = vand.u32 %v1624, 4294901760
    %1998 = vmatpush.xpose.msra.mxu0 %v1997
    %v1999 = vand.u32 %v1621, 4294901760
    %2000 = vmatpush.xpose.msra.mxu0 %v1999
    %v2001 = vand.u32 %v1618, 4294901760
    %2002 = vmatpush.xpose.msra.mxu0 %v2001
    %v2003 = vand.u32 %v1615, 4294901760
    %2004 = vmatpush.xpose.msra.mxu0 %v2003
    %v2005 = vand.u32 %v1612, 4294901760
    %2006 = vmatpush.xpose.msra.mxu0 %v2005
    %v2007 = vand.u32 %v1609, 4294901760
    %2008 = vmatpush.xpose.msra.mxu0 %v2007
    %v2009 = vand.u32 %v1606, 4294901760
    %2010 = vmatpush.xpose.msra.mxu0 %v2009
    %v2011 = vand.u32 %v1600, 4294901760
    %2012 = vmatmul.f32.gmra.mxu0 %v2011
    %v2013 = vpop.f32.mrf.mxu0
    %v2014 = vadd.f32 %v1974, %v2013
    %v2015 = vand.u32 %v1603, 4294901760
    %2016 = vmatmul.f32.gmra.mxu0 %v2015
    %v2017 = vpop.f32.mrf.mxu0
    %2018 = vdwg.mxu0
    %2020 = vset.pattern.permute.xlu0 0
    %2021 = vperm.xlu0 %2020, %v53
    %v2022 = vpop.permute.xlu0 %2021
    %v2024 = vadd.f32 %v2014, %v2022
    %2025 = vst [vmem:[#allocation2] sm:$0x3] %v2024
    // Predicated region
    $region14: #{tpu_custom_call.1} parent=1 // pred_check
      _
    $region15: #{tpu_custom_call.1} parent=1 // pred_check_branch
      %2027 = sbr.rel (0) target = $region17
    $region16: #{tpu_custom_call.1} parent=1 // pred_region
      %2029 = vsyncadd [#allocation3], 0
      %s2031 = sshll.u32 [#allocation2], 4
      %s2032 = int_to_ptr.vmem [resolvable:$true] %s2031
      %s2033 = sshll.u32 %s3, 4
      %s2034 = int_to_ptr.hbm [resolvable:$true] %s2033
      %2036 = dma.vmem_to_hbm [thread:$0]  %s2032, 32, %s2034, [#allocation3]
    $region17: #{tpu_custom_call.1} parent=1 // pred_fallthru
      _
    // Predicated region
    $region18: #{tpu_custom_call.1} parent=1 // pred_check
      _
    $region19: #{tpu_custom_call.1} parent=1 // pred_check_branch
      %2038 = sbr.rel (0) target = $region21
    $region20: #{tpu_custom_call.1} parent=1 // pred_region
      %2040 = dma.done [#allocation3], 32
    $region21: #{tpu_custom_call.1} parent=1 // pred_fallthru
      _
    %2041 = vsyncpa [#allocation3], 1

</llo_original>
